<compile_context>
chip_gen: v7x
topology: tpu7x:2x2x1
jax: 0.10.0
libtpu: 0.0.40
codegen_flags: <defaults>
</compile_context>

<pallas_src>
import functools

import jax
import jax.numpy as jnp
from jax.experimental import pallas as pl
from jax.experimental.pallas import tpu as pltpu

HID_PAD = 128  # pad hidden dim to a full lane tile


def _discriminator_kernel(xT_ref, w1_ref, b1_ref, w2_ref, b2_ref, w3_ref, b3_ref, o_ref):
    xT = xT_ref[...]                                                     # (IN, TB) bf16

    # Layer 1: Linear + (Dropout == id) + ReLU
    h1 = jnp.dot(w1_ref[...], xT, preferred_element_type=jnp.float32) + b1_ref[...]
    h1 = jnp.maximum(h1, 0.0)                                            # (128, TB) f32

    # Layer 2: Linear + (Dropout == id) + ReLU
    h2 = jnp.dot(w2_ref[...], h1.astype(jnp.bfloat16),
                 preferred_element_type=jnp.float32) + b2_ref[...]
    h2 = jnp.maximum(h2, 0.0)                                            # (128, TB) f32

    # Layer 3 (hidden -> 1): VPU mul + sublane reduce (MXU would use 1/128 cols).
    logits = jnp.sum(h2 * w3_ref[...], axis=0, keepdims=True) + b3_ref[0, 0]  # (1, TB)

    # Sigmoid via EUP exp + approximate reciprocal.
    o_ref[...] = pl.reciprocal(1.0 + jnp.exp(-logits), approx=True).astype(o_ref.dtype)


@functools.partial(jax.jit, static_argnames=("tile_b",))
def discriminator_forward(x, params, *, tile_b=1024):
    """x: (B, input_dim) float32. params: logical weights (in,out) / biases (out,)."""
    B, input_dim = x.shape
    hidden_dim = params["w1"].shape[1]
    assert hidden_dim <= HID_PAD

    TB = tile_b
    Bp = pl.cdiv(B, TB) * TB
    num_tiles = Bp // TB

    # Batch on the lane axis: x^T, zero-padded to a multiple of the batch tile, bf16.
    xT = jnp.zeros((input_dim, Bp), jnp.bfloat16).at[:, :B].set(x.astype(jnp.bfloat16).T)

    # Kernel-ready parameters: (out, in) layout, hidden padded to 128.
    w1k = jnp.zeros((HID_PAD, input_dim), jnp.bfloat16).at[:hidden_dim, :].set(
        params["w1"].T.astype(jnp.bfloat16))
    b1k = jnp.zeros((HID_PAD, 1), jnp.float32).at[:hidden_dim, 0].set(params["b1"])
    w2k = jnp.zeros((HID_PAD, HID_PAD), jnp.bfloat16).at[:hidden_dim, :hidden_dim].set(
        params["w2"].T.astype(jnp.bfloat16))
    b2k = jnp.zeros((HID_PAD, 1), jnp.float32).at[:hidden_dim, 0].set(params["b2"])
    w3k = jnp.zeros((HID_PAD, 1), jnp.float32).at[:hidden_dim, :].set(params["w3"])
    b3k = params["b3"].reshape(1, 1).astype(jnp.float32)

    out_t = pl.pallas_call(
        _discriminator_kernel,
        out_shape=jax.ShapeDtypeStruct((1, Bp), jnp.float32),
        grid=(num_tiles,),
        in_specs=[
            pl.BlockSpec((input_dim, TB), lambda i: (0, i)),        # x^T batch tile
            pl.BlockSpec((HID_PAD, input_dim), lambda i: (0, 0)),   # W1 (resident)
            pl.BlockSpec((HID_PAD, 1), lambda i: (0, 0)),           # b1
            pl.BlockSpec((HID_PAD, HID_PAD), lambda i: (0, 0)),     # W2 (resident)
            pl.BlockSpec((HID_PAD, 1), lambda i: (0, 0)),           # b2
            pl.BlockSpec((HID_PAD, 1), lambda i: (0, 0)),           # w3 column
            pl.BlockSpec(memory_space=pltpu.MemorySpace.SMEM),      # b3 scalar
        ],
        out_specs=pl.BlockSpec((1, TB), lambda i: (0, i)),
        compiler_params=pltpu.CompilerParams(
            dimension_semantics=("parallel",),          # independent batch tiles (2 TCs on v7x)
            vmem_limit_bytes=32 * 1024 * 1024,          # safe on v5e/v6e/v7x; tiles need << this
        ),
    )(xT, w1k, b1k, w2k, b2k, w3k, b3k)

    return out_t[0, :B][:, None]


def init_discriminator_params(key, input_dim, hidden_dim):
    """Deterministic synthetic init (PyTorch-style uniform fan-in bounds)."""
    ks = jax.random.split(key, 6)

    def lin(kw, kb, fan_in, fan_out):
        bound = 1.0 / jnp.sqrt(fan_in)
        w = jax.random.uniform(kw, (fan_in, fan_out), jnp.float32, -bound, bound)
        b = jax.random.uniform(kb, (fan_out,), jnp.float32, -bound, bound)
        return w, b

    w1, b1 = lin(ks[0], ks[1], input_dim, hidden_dim)
    w2, b2 = lin(ks[2], ks[3], hidden_dim, hidden_dim)
    w3, b3 = lin(ks[4], ks[5], hidden_dim, 1)
    return {"w1": w1, "b1": b1, "w2": w2, "b2": b2, "w3": w3, "b3": b3}


def _reference_forward(x, p):
    h1 = jnp.maximum(x @ p["w1"] + p["b1"], 0.0)
    h2 = jnp.maximum(h1 @ p["w2"] + p["b2"], 0.0)
    return jax.nn.sigmoid(h2 @ p["w3"] + p["b3"])


if __name__ == "__main__":
    key = jax.random.PRNGKey(0)
    k_x, k_p = jax.random.split(key)

    batch, input_dim, hidden_dim = 8, 16, 32
    x = jax.random.normal(k_x, (batch, input_dim), jnp.float32)
    params = init_discriminator_params(k_p, input_dim, hidden_dim)

    out = jax.block_until_ready(discriminator_forward(x, params))
    ref = _reference_forward(x, params)

    assert out.shape == (batch, 1)
    assert bool(jnp.all(jnp.isfinite(out)))
    # bf16 matmul inputs + approx reciprocal vs. pure-f32 reference.
    assert jnp.allclose(out, ref, atol=2e-2, rtol=2e-2)

    print("KERNEL_OK")
</pallas_src>

<mosaic_0001>
module attributes {stable_mosaic.version = 11 : i64} {
  func.func @_discriminator_kernel(%arg0: i32, %arg1: memref<16x1024xbf16, #tpu.memory_space<vmem>>, %arg2: memref<128x16xbf16, #tpu.memory_space<vmem>>, %arg3: memref<128x1xf32, #tpu.memory_space<vmem>>, %arg4: memref<128x128xbf16, #tpu.memory_space<vmem>>, %arg5: memref<128x1xf32, #tpu.memory_space<vmem>>, %arg6: memref<128x1xf32, #tpu.memory_space<vmem>>, %arg7: memref<1x1xf32, #tpu.memory_space<smem>>, %arg8: memref<1x1024xf32, #tpu.memory_space<vmem>>) attributes {dimension_semantics = [#tpu.dimension_semantics<parallel>], iteration_bounds = array<i64: 1>, scalar_prefetch = 0 : i64, scratch_operands = 0 : i64, tpu.core_type = #tpu.core_type<tc>, window_params = [{transform_indices = @transform_0, window_bounds = array<i64: 16, 1024>}, {pipeline_mode = #tpu.pipeline_mode<synchronous>, transform_indices = @transform_1, window_bounds = array<i64: 128, 16>}, {pipeline_mode = #tpu.pipeline_mode<synchronous>, transform_indices = @transform_2, window_bounds = array<i64: 128, 1>}, {pipeline_mode = #tpu.pipeline_mode<synchronous>, transform_indices = @transform_3, window_bounds = array<i64: 128, 128>}, {pipeline_mode = #tpu.pipeline_mode<synchronous>, transform_indices = @transform_4, window_bounds = array<i64: 128, 1>}, {pipeline_mode = #tpu.pipeline_mode<synchronous>, transform_indices = @transform_5, window_bounds = array<i64: 128, 1>}, {transform_indices = @transform_6, window_bounds = array<i64: 1, 1>}, {transform_indices = @transform_7, window_bounds = array<i64: 1, 1024>}]} {
    %c0 = arith.constant 0 : index
    %c0_0 = arith.constant 0 : index
    %0 = vector.load %arg1[%c0, %c0_0] : memref<16x1024xbf16, #tpu.memory_space<vmem>>, vector<16x1024xbf16>
    %c0_1 = arith.constant 0 : index
    %c0_2 = arith.constant 0 : index
    %1 = vector.load %arg2[%c0_1, %c0_2] : memref<128x16xbf16, #tpu.memory_space<vmem>>, vector<128x16xbf16>
    %cst = arith.constant dense<0.000000e+00> : vector<128x1024xf32>
    %2 = tpu.matmul %1, %0, %cst {dimension_numbers = #tpu.dot_dimension_numbers<[1], [0], [0], [1], [0, 0, 1, 1], [], []>} : vector<128x16xbf16>, vector<16x1024xbf16>, vector<128x1024xf32> -> vector<128x1024xf32>
    %c0_3 = arith.constant 0 : index
    %c0_4 = arith.constant 0 : index
    %3 = vector.load %arg3[%c0_3, %c0_4] : memref<128x1xf32, #tpu.memory_space<vmem>>, vector<128x1xf32>
    %4 = vector.broadcast %3 : vector<128x1xf32> to vector<128x1024xf32>
    %5 = arith.addf %2, %4 : vector<128x1024xf32>
    %cst_5 = arith.constant 0.000000e+00 : f32
    %6 = vector.broadcast %cst_5 : f32 to vector<128x1024xf32>
    %7 = arith.maximumf %5, %6 : vector<128x1024xf32>
    %c0_6 = arith.constant 0 : index
    %c0_7 = arith.constant 0 : index
    %8 = vector.load %arg4[%c0_6, %c0_7] : memref<128x128xbf16, #tpu.memory_space<vmem>>, vector<128x128xbf16>
    %9 = arith.truncf %7 : vector<128x1024xf32> to vector<128x1024xbf16>
    %cst_8 = arith.constant dense<0.000000e+00> : vector<128x1024xf32>
    %10 = tpu.matmul %8, %9, %cst_8 {dimension_numbers = #tpu.dot_dimension_numbers<[1], [0], [0], [1], [0, 0, 1, 1], [], []>} : vector<128x128xbf16>, vector<128x1024xbf16>, vector<128x1024xf32> -> vector<128x1024xf32>
    %c0_9 = arith.constant 0 : index
    %c0_10 = arith.constant 0 : index
    %11 = vector.load %arg5[%c0_9, %c0_10] : memref<128x1xf32, #tpu.memory_space<vmem>>, vector<128x1xf32>
    %12 = vector.broadcast %11 : vector<128x1xf32> to vector<128x1024xf32>
    %13 = arith.addf %10, %12 : vector<128x1024xf32>
    %cst_11 = arith.constant 0.000000e+00 : f32
    %14 = vector.broadcast %cst_11 : f32 to vector<128x1024xf32>
    %15 = arith.maximumf %13, %14 : vector<128x1024xf32>
    %c0_12 = arith.constant 0 : index
    %c0_13 = arith.constant 0 : index
    %16 = vector.load %arg6[%c0_12, %c0_13] : memref<128x1xf32, #tpu.memory_space<vmem>>, vector<128x1xf32>
    %17 = vector.broadcast %16 : vector<128x1xf32> to vector<128x1024xf32>
    %18 = arith.mulf %15, %17 : vector<128x1024xf32>
    %cst_14 = arith.constant dense<0.000000e+00> : vector<1024xf32>
    %19 = vector.multi_reduction <add>, %18, %cst_14 [0] : vector<128x1024xf32> to vector<1024xf32>
    %20 = vector.shape_cast %19 : vector<1024xf32> to vector<1x1024xf32>
    %c0_15 = arith.constant 0 : index
    %c0_16 = arith.constant 0 : index
    %21 = memref.load %arg7[%c0_15, %c0_16] : memref<1x1xf32, #tpu.memory_space<smem>>
    %22 = vector.broadcast %21 : f32 to vector<1x1024xf32>
    %23 = arith.addf %20, %22 : vector<1x1024xf32>
    %cst_17 = arith.constant 0.000000e+00 : f32
    %24 = vector.broadcast %cst_17 : f32 to vector<1x1024xf32>
    %25 = arith.subf %24, %23 : vector<1x1024xf32>
    %26 = math.exp %25 : vector<1x1024xf32>
    %cst_18 = arith.constant 1.000000e+00 : f32
    %27 = vector.broadcast %cst_18 : f32 to vector<1x1024xf32>
    %28 = arith.addf %27, %26 : vector<1x1024xf32>
    %29 = tpu.reciprocal %28 {approx = true} : vector<1x1024xf32> -> vector<1x1024xf32>
    %c0_19 = arith.constant 0 : index
    %c0_20 = arith.constant 0 : index
    %30 = vector.load %arg8[%c0_19, %c0_20] : memref<1x1024xf32, #tpu.memory_space<vmem>>, vector<1x1024xf32>
    tpu.vector_store %arg8[%c0_19, %c0_20], %29 {strides = array<i32>} : memref<1x1024xf32, #tpu.memory_space<vmem>>, vector<1x1024xf32>,
    return
  }
  func.func @transform_0(%arg0: i32) -> (i32, i32) {
    %c0_i32 = arith.constant 0 : i32
    %c0_i32_0 = arith.constant 0 : i32
    return %c0_i32, %arg0 : i32, i32
  }
  func.func @transform_1(%arg0: i32) -> (i32, i32) {
    %c0_i32 = arith.constant 0 : i32
    %c0_i32_0 = arith.constant 0 : i32
    %c0_i32_1 = arith.constant 0 : i32
    return %c0_i32, %c0_i32_0 : i32, i32
  }
  func.func @transform_2(%arg0: i32) -> (i32, i32) {
    %c0_i32 = arith.constant 0 : i32
    %c0_i32_0 = arith.constant 0 : i32
    %c0_i32_1 = arith.constant 0 : i32
    return %c0_i32, %c0_i32_0 : i32, i32
  }
  func.func @transform_3(%arg0: i32) -> (i32, i32) {
    %c0_i32 = arith.constant 0 : i32
    %c0_i32_0 = arith.constant 0 : i32
    %c0_i32_1 = arith.constant 0 : i32
    return %c0_i32, %c0_i32_0 : i32, i32
  }
  func.func @transform_4(%arg0: i32) -> (i32, i32) {
    %c0_i32 = arith.constant 0 : i32
    %c0_i32_0 = arith.constant 0 : i32
    %c0_i32_1 = arith.constant 0 : i32
    return %c0_i32, %c0_i32_0 : i32, i32
  }
  func.func @transform_5(%arg0: i32) -> (i32, i32) {
    %c0_i32 = arith.constant 0 : i32
    %c0_i32_0 = arith.constant 0 : i32
    %c0_i32_1 = arith.constant 0 : i32
    return %c0_i32, %c0_i32_0 : i32, i32
  }
  func.func @transform_6(%arg0: i32) -> (i32, i32) {
    %c0_i32 = arith.constant 0 : i32
    %c0_i32_0 = arith.constant 0 : i32
    %c0_i32_1 = arith.constant 0 : i32
    return %c0_i32, %c0_i32_0 : i32, i32
  }
  func.func @transform_7(%arg0: i32) -> (i32, i32) {
    %c0_i32 = arith.constant 0 : i32
    %c0_i32_0 = arith.constant 0 : i32
    return %c0_i32, %arg0 : i32, i32
  }
}

</mosaic_0001>

<llo_original>
// kernel: discriminator_forward.1
$region0: #{discriminator_forward.1}
  #allocation0 [shape = 'u32[]', space=smem, size = 0x4, offset = 0x4, fixed_abs, tag = 'smem constant byte address 0x4 - core index']
  #allocation1 [shape = 'u32[144,128]{1,0:T(1,128)}', space=vmem, size = 0x12000, scoped, tag = 'internal scratch']
  #allocation2 [shape = 'f32[1,1]{1,0:T(1,128)S(6)}', space=smem, size = 0x200, scoped, tag = 'scoped memory for discriminator_forward.1']
  %s0 = inlined_call_operand.vmem [shape: bf16[16,1024], index: 0, kind: input, shape index: {}]
  %s1 = inlined_call_operand.vmem [shape: bf16[128,16], index: 1, kind: input, shape index: {}]
  %s2 = inlined_call_operand.vmem [shape: f32[128,1], index: 2, kind: input, shape index: {}]
  %s3 = inlined_call_operand.vmem [shape: bf16[128,128], index: 3, kind: input, shape index: {}]
  %s4 = inlined_call_operand.vmem [shape: f32[128,1], index: 4, kind: input, shape index: {}]
  %s5 = inlined_call_operand.vmem [shape: f32[128,1], index: 5, kind: input, shape index: {}]
  %s6 = inlined_call_operand.<no memory space> [shape: f32[1,1], index: 6, kind: input, shape index: {}]
  %s7 = inlined_call_operand.vmem [shape: f32[1,1024], index: 7, kind: output, shape index: {}]
  %s8 = sld [smem:[#allocation0]]
  $region38: #{discriminator_forward.1} parent=0
    _
  %s10 = ssub.s32 1, %s8
  %s11 = scalar_select 0, %s10, %s8
  %12 = sst [smem:[#allocation2]] %s6
  // Predicated region
  $region2: #{discriminator_forward.1} parent=0 // pred_check
    _
  $region3: #{discriminator_forward.1} parent=0 // pred_check_branch
    %14 = sbr.rel (0) target = $region5
  $region4: #{discriminator_forward.1} parent=0 // pred_region
    _
  $region5: #{discriminator_forward.1} parent=0 // pred_fallthru
    _
  // Predicated region
  $region6: #{discriminator_forward.1} parent=0 // pred_check
    _
  $region7: #{discriminator_forward.1} parent=0 // pred_check_branch
    %16 = sbr.rel (0) target = $region9
  $region8: #{discriminator_forward.1} parent=0 // pred_region
    _
  $region9: #{discriminator_forward.1} parent=0 // pred_fallthru
    _
  // Predicated region
  $region10: #{discriminator_forward.1} parent=0 // pred_check
    _
  $region11: #{discriminator_forward.1} parent=0 // pred_check_branch
    %18 = sbr.rel (0) target = $region13
  $region12: #{discriminator_forward.1} parent=0 // pred_region
    _
  $region13: #{discriminator_forward.1} parent=0 // pred_fallthru
    _
  // Predicated region
  $region14: #{discriminator_forward.1} parent=0 // pred_check
    _
  $region15: #{discriminator_forward.1} parent=0 // pred_check_branch
    %20 = sbr.rel (0) target = $region17
  $region16: #{discriminator_forward.1} parent=0 // pred_region
    _
  $region17: #{discriminator_forward.1} parent=0 // pred_fallthru
    _
  // Predicated region
  $region18: #{discriminator_forward.1} parent=0 // pred_check
    _
  $region19: #{discriminator_forward.1} parent=0 // pred_check_branch
    %22 = sbr.rel (0) target = $region21
  $region20: #{discriminator_forward.1} parent=0 // pred_region
    _
  $region21: #{discriminator_forward.1} parent=0 // pred_fallthru
    _
  // Predicated region
  $region22: #{discriminator_forward.1} parent=0 // pred_check
    _
  $region23: #{discriminator_forward.1} parent=0 // pred_check_branch
    %24 = sbr.rel (0) target = $region25
  $region24: #{discriminator_forward.1} parent=0 // pred_region
    _
  $region25: #{discriminator_forward.1} parent=0 // pred_fallthru
    _
  // Predicated region
  $region26: #{discriminator_forward.1} parent=0 // pred_check
    _
  $region27: #{discriminator_forward.1} parent=0 // pred_check_branch
    %26 = sbr.rel (0) target = $region29
  $region28: #{discriminator_forward.1} parent=0 // pred_region
    _
  $region29: #{discriminator_forward.1} parent=0 // pred_fallthru
    _
  %v28 = vld [vmem:[%s0] sm:$0xff]
  %v29 = vld [vmem:[%s0 + $0x8] sm:$0xff]
  %v30 = vld [vmem:[%s0 + $0x10] sm:$0xff]
  %v31 = vld [vmem:[%s0 + $0x18] sm:$0xff]
  %v32 = vld [vmem:[%s0 + $0x20] sm:$0xff]
  %v33 = vld [vmem:[%s0 + $0x28] sm:$0xff]
  %v34 = vld [vmem:[%s0 + $0x30] sm:$0xff]
  %v35 = vld [vmem:[%s0 + $0x38] sm:$0xff]
  %v36 = vld [vmem:[%s1] sm:$0xf]
  %v37 = vld [vmem:[%s1 + $0x4] sm:$0xf]
  %v38 = vld [vmem:[%s1 + $0x8] sm:$0xf]
  %v39 = vld [vmem:[%s1 + $0xc] sm:$0xf]
  %v40 = vld [vmem:[%s1 + $0x10] sm:$0xf]
  %v41 = vld [vmem:[%s1 + $0x14] sm:$0xf]
  %v42 = vld [vmem:[%s1 + $0x18] sm:$0xf]
  %v43 = vld [vmem:[%s1 + $0x1c] sm:$0xf]
  %v44 = vld [vmem:[%s1 + $0x20] sm:$0xf]
  %v45 = vld [vmem:[%s1 + $0x24] sm:$0xf]
  %v46 = vld [vmem:[%s1 + $0x28] sm:$0xf]
  %v47 = vld [vmem:[%s1 + $0x2c] sm:$0xf]
  %v48 = vld [vmem:[%s1 + $0x30] sm:$0xf]
  %v49 = vld [vmem:[%s1 + $0x34] sm:$0xf]
  %v50 = vld [vmem:[%s1 + $0x38] sm:$0xf]
  %v51 = vld [vmem:[%s1 + $0x3c] sm:$0xf]
  %v52 = vld [vmem:[%s2] sm:$0xff]
  %v53 = vld [vmem:[%s2 + $0x8] sm:$0xff]
  %v54 = vld [vmem:[%s2 + $0x10] sm:$0xff]
  %v55 = vld [vmem:[%s2 + $0x18] sm:$0xff]
  %v56 = vld [vmem:[%s2 + $0x20] sm:$0xff]
  %v57 = vld [vmem:[%s2 + $0x28] sm:$0xff]
  %v58 = vld [vmem:[%s2 + $0x30] sm:$0xff]
  %v59 = vld [vmem:[%s2 + $0x38] sm:$0xff]
  %v60 = vld [vmem:[%s2 + $0x40] sm:$0xff]
  %v61 = vld [vmem:[%s2 + $0x48] sm:$0xff]
  %v62 = vld [vmem:[%s2 + $0x50] sm:$0xff]
  %v63 = vld [vmem:[%s2 + $0x58] sm:$0xff]
  %v64 = vld [vmem:[%s2 + $0x60] sm:$0xff]
  %v65 = vld [vmem:[%s2 + $0x68] sm:$0xff]
  %v66 = vld [vmem:[%s2 + $0x70] sm:$0xff]
  %v67 = vld [vmem:[%s2 + $0x78] sm:$0xff]
  %69 = vset.pattern.permute.xlu0 0
  %70 = vperm.xlu0 %69, %v52
  %v71 = vpop.permute.xlu0 %70
  %74 = vset.pattern.permute.xlu0 0
  %75 = vperm.xlu0 %74, %v53
  %v76 = vpop.permute.xlu0 %75
  %79 = vset.pattern.permute.xlu0 0
  %80 = vperm.xlu0 %79, %v54
  %v81 = vpop.permute.xlu0 %80
  %84 = vset.pattern.permute.xlu0 0
  %85 = vperm.xlu0 %84, %v55
  %v86 = vpop.permute.xlu0 %85
  %89 = vset.pattern.permute.xlu0 0
  %90 = vperm.xlu0 %89, %v56
  %v91 = vpop.permute.xlu0 %90
  %94 = vset.pattern.permute.xlu0 0
  %95 = vperm.xlu0 %94, %v57
  %v96 = vpop.permute.xlu0 %95
  %99 = vset.pattern.permute.xlu0 0
  %100 = vperm.xlu0 %99, %v58
  %v101 = vpop.permute.xlu0 %100
  %104 = vset.pattern.permute.xlu0 0
  %105 = vperm.xlu0 %104, %v59
  %v106 = vpop.permute.xlu0 %105
  %109 = vset.pattern.permute.xlu0 0
  %110 = vperm.xlu0 %109, %v60
  %v111 = vpop.permute.xlu0 %110
  %114 = vset.pattern.permute.xlu0 0
  %115 = vperm.xlu0 %114, %v61
  %v116 = vpop.permute.xlu0 %115
  %119 = vset.pattern.permute.xlu0 0
  %120 = vperm.xlu0 %119, %v62
  %v121 = vpop.permute.xlu0 %120
  %124 = vset.pattern.permute.xlu0 0
  %125 = vperm.xlu0 %124, %v63
  %v126 = vpop.permute.xlu0 %125
  %129 = vset.pattern.permute.xlu0 0
  %130 = vperm.xlu0 %129, %v64
  %v131 = vpop.permute.xlu0 %130
  %134 = vset.pattern.permute.xlu0 0
  %135 = vperm.xlu0 %134, %v65
  %v136 = vpop.permute.xlu0 %135
  %139 = vset.pattern.permute.xlu0 0
  %140 = vperm.xlu0 %139, %v66
  %v141 = vpop.permute.xlu0 %140
  %144 = vset.pattern.permute.xlu0 0
  %145 = vperm.xlu0 %144, %v67
  %v146 = vpop.permute.xlu0 %145
  %v164 = vunpack.c.l.b16 %v36
  %v165 = vunpack.c.l.b16 %v37
  %v166 = vunpack.c.l.b16 %v38
  %v167 = vunpack.c.l.b16 %v39
  %v168 = vunpack.c.l.b16 %v40
  %v169 = vunpack.c.l.b16 %v41
  %v170 = vunpack.c.l.b16 %v42
  %v171 = vunpack.c.l.b16 %v43
  %v172 = vunpack.c.l.b16 %v44
  %v173 = vunpack.c.l.b16 %v45
  %v174 = vunpack.c.l.b16 %v46
  %v175 = vunpack.c.l.b16 %v47
  %v176 = vunpack.c.l.b16 %v48
  %v177 = vunpack.c.l.b16 %v49
  %v178 = vunpack.c.l.b16 %v50
  %v179 = vunpack.c.l.b16 %v51
  %v180 = vpack.c.b16 %v165, %v164
  %v181 = vpack.c.b16 %v167, %v166
  %v182 = vpack.c.b16 %v169, %v168
  %v183 = vpack.c.b16 %v171, %v170
  %v184 = vpack.c.b16 %v173, %v172
  %v185 = vpack.c.b16 %v175, %v174
  %v186 = vpack.c.b16 %v177, %v176
  %v187 = vpack.c.b16 %v179, %v178
  %v196 = vunpack.c.l.b16 %v28
  %v197 = vunpack.c.h.b16 %v28
  %v198 = vunpack.c.l.b16 %v29
  %v199 = vunpack.c.h.b16 %v29
  %v200 = vunpack.c.l.b16 %v30
  %v201 = vunpack.c.h.b16 %v30
  %v202 = vunpack.c.l.b16 %v31
  %v203 = vunpack.c.h.b16 %v31
  %v204 = vunpack.c.l.b16 %v32
  %v205 = vunpack.c.h.b16 %v32
  %v206 = vunpack.c.l.b16 %v33
  %v207 = vunpack.c.h.b16 %v33
  %v208 = vunpack.c.l.b16 %v34
  %v209 = vunpack.c.h.b16 %v34
  %v210 = vunpack.c.l.b16 %v35
  %v211 = vunpack.c.h.b16 %v35
  %v212 = vpack.c.b16 %v204, %v196
  %v213 = vpack.c.b16 %v205, %v197
  %v214 = vpack.c.b16 %v206, %v198
  %v215 = vpack.c.b16 %v207, %v199
  %v216 = vpack.c.b16 %v208, %v200
  %v217 = vpack.c.b16 %v209, %v201
  %v218 = vpack.c.b16 %v210, %v202
  %v219 = vpack.c.b16 %v211, %v203
  %vm228 = vcmask 130048
  %v230 = vsel %vm228, %v180, 0
  %v233 = vsel %vm228, %v181, 0
  %v236 = vsel %vm228, %v182, 0
  %v239 = vsel %vm228, %v183, 0
  %v242 = vsel %vm228, %v184, 0
  %v245 = vsel %vm228, %v185, 0
  %v248 = vsel %vm228, %v186, 0
  %v251 = vsel %vm228, %v187, 0
  %253 = vmatprep.subr.bf16.mxu0 %v213
  %254 = vmatpush1.bf16.msra.mxu0 %v212
  %255 = vmatprep.subr.bf16.mxu0 0
  %256 = vmatpush1.bf16.msra.mxu0 0
  %257 = vmatprep.subr.bf16.mxu0 0
  %258 = vmatpush1.bf16.msra.mxu0 0
  %259 = vmatprep.subr.bf16.mxu0 0
  %260 = vmatpush1.bf16.msra.mxu0 0
  %261 = vmatprep.subr.bf16.mxu0 0
  %262 = vmatpush1.bf16.msra.mxu0 0
  %263 = vmatprep.subr.bf16.mxu0 0
  %264 = vmatpush1.bf16.msra.mxu0 0
  %265 = vmatprep.subr.bf16.mxu0 0
  %266 = vmatpush1.bf16.msra.mxu0 0
  %267 = vmatprep.subr.bf16.mxu0 0
  %268 = vmatpush1.bf16.msra.mxu0 0
  %269 = vmatprep.subr.bf16.mxu0 0
  %270 = vmatpush1.bf16.msra.mxu0 0
  %271 = vmatprep.subr.bf16.mxu0 0
  %272 = vmatpush1.bf16.msra.mxu0 0
  %273 = vmatprep.subr.bf16.mxu0 0
  %274 = vmatpush1.bf16.msra.mxu0 0
  %275 = vmatprep.subr.bf16.mxu0 0
  %276 = vmatpush1.bf16.msra.mxu0 0
  %277 = vmatprep.subr.bf16.mxu0 0
  %278 = vmatpush1.bf16.msra.mxu0 0
  %279 = vmatprep.subr.bf16.mxu0 0
  %280 = vmatpush1.bf16.msra.mxu0 0
  %281 = vmatprep.subr.bf16.mxu0 0
  %282 = vmatpush1.bf16.msra.mxu0 0
  %283 = vmatprep.subr.bf16.mxu0 0
  %284 = vmatpush1.bf16.msra.mxu0 0
  %285 = vmatprep.mubr.bf16.mxu0 0
  %286 = vmatmul.mubr.bf16.gmra.mrb[0].mxu0 %v230
  %v287 = vpop.f32.mrb[0].mxu0
  %v288 = vadd.f32 %v71, %v287
  %v289 = vpop.f32.mrb[0].mxu0
  %v290 = vadd.f32 %v71, %v289
  %v291 = vpop.f32.mrb[0].mxu0
  %v292 = vadd.f32 %v76, %v291
  %v293 = vpop.f32.mrb[0].mxu0
  %v294 = vadd.f32 %v76, %v293
  %295 = vmatprep.mubr.bf16.mxu0 0
  %296 = vmatmul.mubr.bf16.gmra.mrb[0].mxu0 %v233
  %v297 = vpop.f32.mrb[0].mxu0
  %v298 = vadd.f32 %v81, %v297
  %v299 = vpop.f32.mrb[0].mxu0
  %v300 = vadd.f32 %v81, %v299
  %v301 = vpop.f32.mrb[0].mxu0
  %v302 = vadd.f32 %v86, %v301
  %v303 = vpop.f32.mrb[0].mxu0
  %v304 = vadd.f32 %v86, %v303
  %305 = vmatprep.mubr.bf16.mxu0 0
  %306 = vmatmul.mubr.bf16.gmra.mrb[0].mxu0 %v236
  %v307 = vpop.f32.mrb[0].mxu0
  %v308 = vadd.f32 %v91, %v307
  %v309 = vpop.f32.mrb[0].mxu0
  %v310 = vadd.f32 %v91, %v309
  %v311 = vpop.f32.mrb[0].mxu0
  %v312 = vadd.f32 %v96, %v311
  %v313 = vpop.f32.mrb[0].mxu0
  %v314 = vadd.f32 %v96, %v313
  %315 = vmatprep.mubr.bf16.mxu0 0
  %316 = vmatmul.mubr.bf16.gmra.mrb[0].mxu0 %v239
  %v317 = vpop.f32.mrb[0].mxu0
  %v318 = vadd.f32 %v101, %v317
  %v319 = vpop.f32.mrb[0].mxu0
  %v320 = vadd.f32 %v101, %v319
  %v321 = vpop.f32.mrb[0].mxu0
  %v322 = vadd.f32 %v106, %v321
  %v323 = vpop.f32.mrb[0].mxu0
  %v324 = vadd.f32 %v106, %v323
  %325 = vmatprep.mubr.bf16.mxu0 0
  %326 = vmatmul.mubr.bf16.gmra.mrb[0].mxu0 %v242
  %v327 = vpop.f32.mrb[0].mxu0
  %v328 = vadd.f32 %v111, %v327
  %v329 = vpop.f32.mrb[0].mxu0
  %v330 = vadd.f32 %v111, %v329
  %v331 = vpop.f32.mrb[0].mxu0
  %v332 = vadd.f32 %v116, %v331
  %v333 = vpop.f32.mrb[0].mxu0
  %v334 = vadd.f32 %v116, %v333
  %335 = vmatprep.mubr.bf16.mxu0 0
  %336 = vmatmul.mubr.bf16.gmra.mrb[0].mxu0 %v245
  %v337 = vpop.f32.mrb[0].mxu0
  %v338 = vadd.f32 %v121, %v337
  %v339 = vpop.f32.mrb[0].mxu0
  %v340 = vadd.f32 %v121, %v339
  %v341 = vpop.f32.mrb[0].mxu0
  %v342 = vadd.f32 %v126, %v341
  %v343 = vpop.f32.mrb[0].mxu0
  %v344 = vadd.f32 %v126, %v343
  %345 = vmatprep.mubr.bf16.mxu0 0
  %346 = vmatmul.mubr.bf16.gmra.mrb[0].mxu0 %v248
  %v347 = vpop.f32.mrb[0].mxu0
  %v348 = vadd.f32 %v131, %v347
  %v349 = vpop.f32.mrb[0].mxu0
  %v350 = vadd.f32 %v131, %v349
  %v351 = vpop.f32.mrb[0].mxu0
  %v352 = vadd.f32 %v136, %v351
  %v353 = vpop.f32.mrb[0].mxu0
  %v354 = vadd.f32 %v136, %v353
  %355 = vmatprep.mubr.bf16.mxu0 0
  %356 = vmatmul.mubr.bf16.gmra.mrb[0].mxu0 %v251
  %v357 = vpop.f32.mrb[0].mxu0
  %v358 = vadd.f32 %v141, %v357
  %v359 = vpop.f32.mrb[0].mxu0
  %v360 = vadd.f32 %v141, %v359
  %v361 = vpop.f32.mrb[0].mxu0
  %v362 = vadd.f32 %v146, %v361
  %v363 = vpop.f32.mrb[0].mxu0
  %v364 = vadd.f32 %v146, %v363
  %365 = vdwg.mxu0
  %366 = vmatprep.subr.bf16.mxu0 %v215
  %367 = vmatpush1.bf16.msra.mxu0 %v214
  %368 = vmatprep.subr.bf16.mxu0 0
  %369 = vmatpush1.bf16.msra.mxu0 0
  %370 = vmatprep.subr.bf16.mxu0 0
  %371 = vmatpush1.bf16.msra.mxu0 0
  %372 = vmatprep.subr.bf16.mxu0 0
  %373 = vmatpush1.bf16.msra.mxu0 0
  %374 = vmatprep.subr.bf16.mxu0 0
  %375 = vmatpush1.bf16.msra.mxu0 0
  %376 = vmatprep.subr.bf16.mxu0 0
  %377 = vmatpush1.bf16.msra.mxu0 0
  %378 = vmatprep.subr.bf16.mxu0 0
  %379 = vmatpush1.bf16.msra.mxu0 0
  %380 = vmatprep.subr.bf16.mxu0 0
  %381 = vmatpush1.bf16.msra.mxu0 0
  %382 = vmatprep.subr.bf16.mxu0 0
  %383 = vmatpush1.bf16.msra.mxu0 0
  %384 = vmatprep.subr.bf16.mxu0 0
  %385 = vmatpush1.bf16.msra.mxu0 0
  %386 = vmatprep.subr.bf16.mxu0 0
  %387 = vmatpush1.bf16.msra.mxu0 0
  %388 = vmatprep.subr.bf16.mxu0 0
  %389 = vmatpush1.bf16.msra.mxu0 0
  %390 = vmatprep.subr.bf16.mxu0 0
  %391 = vmatpush1.bf16.msra.mxu0 0
  %392 = vmatprep.subr.bf16.mxu0 0
  %393 = vmatpush1.bf16.msra.mxu0 0
  %394 = vmatprep.subr.bf16.mxu0 0
  %395 = vmatpush1.bf16.msra.mxu0 0
  %396 = vmatprep.subr.bf16.mxu0 0
  %397 = vmatpush1.bf16.msra.mxu0 0
  %398 = vmatprep.mubr.bf16.mxu0 0
  %399 = vmatmul.mubr.bf16.gmra.mrb[0].mxu0 %v230
  %v400 = vpop.f32.mrb[0].mxu0
  %v401 = vadd.f32 %v71, %v400
  %v402 = vpop.f32.mrb[0].mxu0
  %v403 = vadd.f32 %v71, %v402
  %v404 = vpop.f32.mrb[0].mxu0
  %v405 = vadd.f32 %v76, %v404
  %v406 = vpop.f32.mrb[0].mxu0
  %v407 = vadd.f32 %v76, %v406
  %408 = vmatprep.mubr.bf16.mxu0 0
  %409 = vmatmul.mubr.bf16.gmra.mrb[0].mxu0 %v233
  %v410 = vpop.f32.mrb[0].mxu0
  %v411 = vadd.f32 %v81, %v410
  %v412 = vpop.f32.mrb[0].mxu0
  %v413 = vadd.f32 %v81, %v412
  %v414 = vpop.f32.mrb[0].mxu0
  %v415 = vadd.f32 %v86, %v414
  %v416 = vpop.f32.mrb[0].mxu0
  %v417 = vadd.f32 %v86, %v416
  %418 = vmatprep.mubr.bf16.mxu0 0
  %419 = vmatmul.mubr.bf16.gmra.mrb[0].mxu0 %v236
  %v420 = vpop.f32.mrb[0].mxu0
  %v421 = vadd.f32 %v91, %v420
  %v422 = vpop.f32.mrb[0].mxu0
  %v423 = vadd.f32 %v91, %v422
  %v424 = vpop.f32.mrb[0].mxu0
  %v425 = vadd.f32 %v96, %v424
  %v426 = vpop.f32.mrb[0].mxu0
  %v427 = vadd.f32 %v96, %v426
  %428 = vmatprep.mubr.bf16.mxu0 0
  %429 = vmatmul.mubr.bf16.gmra.mrb[0].mxu0 %v239
  %v430 = vpop.f32.mrb[0].mxu0
  %v431 = vadd.f32 %v101, %v430
  %v432 = vpop.f32.mrb[0].mxu0
  %v433 = vadd.f32 %v101, %v432
  %v434 = vpop.f32.mrb[0].mxu0
  %v435 = vadd.f32 %v106, %v434
  %v436 = vpop.f32.mrb[0].mxu0
  %v437 = vadd.f32 %v106, %v436
  %438 = vmatprep.mubr.bf16.mxu0 0
  %439 = vmatmul.mubr.bf16.gmra.mrb[0].mxu0 %v242
  %v440 = vpop.f32.mrb[0].mxu0
  %v441 = vadd.f32 %v111, %v440
  %v442 = vpop.f32.mrb[0].mxu0
  %v443 = vadd.f32 %v111, %v442
  %v444 = vpop.f32.mrb[0].mxu0
  %v445 = vadd.f32 %v116, %v444
  %v446 = vpop.f32.mrb[0].mxu0
  %v447 = vadd.f32 %v116, %v446
  %448 = vmatprep.mubr.bf16.mxu0 0
  %449 = vmatmul.mubr.bf16.gmra.mrb[0].mxu0 %v245
  %v450 = vpop.f32.mrb[0].mxu0
  %v451 = vadd.f32 %v121, %v450
  %v452 = vpop.f32.mrb[0].mxu0
  %v453 = vadd.f32 %v121, %v452
  %v454 = vpop.f32.mrb[0].mxu0
  %v455 = vadd.f32 %v126, %v454
  %v456 = vpop.f32.mrb[0].mxu0
  %v457 = vadd.f32 %v126, %v456
  %458 = vmatprep.mubr.bf16.mxu0 0
  %459 = vmatmul.mubr.bf16.gmra.mrb[0].mxu0 %v248
  %v460 = vpop.f32.mrb[0].mxu0
  %v461 = vadd.f32 %v131, %v460
  %v462 = vpop.f32.mrb[0].mxu0
  %v463 = vadd.f32 %v131, %v462
  %v464 = vpop.f32.mrb[0].mxu0
  %v465 = vadd.f32 %v136, %v464
  %v466 = vpop.f32.mrb[0].mxu0
  %v467 = vadd.f32 %v136, %v466
  %468 = vmatprep.mubr.bf16.mxu0 0
  %469 = vmatmul.mubr.bf16.gmra.mrb[0].mxu0 %v251
  %v470 = vpop.f32.mrb[0].mxu0
  %v471 = vadd.f32 %v141, %v470
  %v472 = vpop.f32.mrb[0].mxu0
  %v473 = vadd.f32 %v141, %v472
  %v474 = vpop.f32.mrb[0].mxu0
  %v475 = vadd.f32 %v146, %v474
  %v476 = vpop.f32.mrb[0].mxu0
  %v477 = vadd.f32 %v146, %v476
  %478 = vdwg.mxu0
  %479 = vmatprep.subr.bf16.mxu0 %v217
  %480 = vmatpush1.bf16.msra.mxu0 %v216
  %481 = vmatprep.subr.bf16.mxu0 0
  %482 = vmatpush1.bf16.msra.mxu0 0
  %483 = vmatprep.subr.bf16.mxu0 0
  %484 = vmatpush1.bf16.msra.mxu0 0
  %485 = vmatprep.subr.bf16.mxu0 0
  %486 = vmatpush1.bf16.msra.mxu0 0
  %487 = vmatprep.subr.bf16.mxu0 0
  %488 = vmatpush1.bf16.msra.mxu0 0
  %489 = vmatprep.subr.bf16.mxu0 0
  %490 = vmatpush1.bf16.msra.mxu0 0
  %491 = vmatprep.subr.bf16.mxu0 0
  %492 = vmatpush1.bf16.msra.mxu0 0
  %493 = vmatprep.subr.bf16.mxu0 0
  %494 = vmatpush1.bf16.msra.mxu0 0
  %495 = vmatprep.subr.bf16.mxu0 0
  %496 = vmatpush1.bf16.msra.mxu0 0
  %497 = vmatprep.subr.bf16.mxu0 0
  %498 = vmatpush1.bf16.msra.mxu0 0
  %499 = vmatprep.subr.bf16.mxu0 0
  %500 = vmatpush1.bf16.msra.mxu0 0
  %501 = vmatprep.subr.bf16.mxu0 0
  %502 = vmatpush1.bf16.msra.mxu0 0
  %503 = vmatprep.subr.bf16.mxu0 0
  %504 = vmatpush1.bf16.msra.mxu0 0
  %505 = vmatprep.subr.bf16.mxu0 0
  %506 = vmatpush1.bf16.msra.mxu0 0
  %507 = vmatprep.subr.bf16.mxu0 0
  %508 = vmatpush1.bf16.msra.mxu0 0
  %509 = vmatprep.subr.bf16.mxu0 0
  %510 = vmatpush1.bf16.msra.mxu0 0
  %511 = vmatprep.mubr.bf16.mxu0 0
  %512 = vmatmul.mubr.bf16.gmra.mrb[0].mxu0 %v230
  %v513 = vpop.f32.mrb[0].mxu0
  %v514 = vadd.f32 %v71, %v513
  %v515 = vpop.f32.mrb[0].mxu0
  %v516 = vadd.f32 %v71, %v515
  %v517 = vpop.f32.mrb[0].mxu0
  %v518 = vadd.f32 %v76, %v517
  %v519 = vpop.f32.mrb[0].mxu0
  %v520 = vadd.f32 %v76, %v519
  %521 = vmatprep.mubr.bf16.mxu0 0
  %522 = vmatmul.mubr.bf16.gmra.mrb[0].mxu0 %v233
  %v523 = vpop.f32.mrb[0].mxu0
  %v524 = vadd.f32 %v81, %v523
  %v525 = vpop.f32.mrb[0].mxu0
  %v526 = vadd.f32 %v81, %v525
  %v527 = vpop.f32.mrb[0].mxu0
  %v528 = vadd.f32 %v86, %v527
  %v529 = vpop.f32.mrb[0].mxu0
  %v530 = vadd.f32 %v86, %v529
  %531 = vmatprep.mubr.bf16.mxu0 0
  %532 = vmatmul.mubr.bf16.gmra.mrb[0].mxu0 %v236
  %v533 = vpop.f32.mrb[0].mxu0
  %v534 = vadd.f32 %v91, %v533
  %v535 = vpop.f32.mrb[0].mxu0
  %v536 = vadd.f32 %v91, %v535
  %v537 = vpop.f32.mrb[0].mxu0
  %v538 = vadd.f32 %v96, %v537
  %v539 = vpop.f32.mrb[0].mxu0
  %v540 = vadd.f32 %v96, %v539
  %541 = vmatprep.mubr.bf16.mxu0 0
  %542 = vmatmul.mubr.bf16.gmra.mrb[0].mxu0 %v239
  %v543 = vpop.f32.mrb[0].mxu0
  %v544 = vadd.f32 %v101, %v543
  %v545 = vpop.f32.mrb[0].mxu0
  %v546 = vadd.f32 %v101, %v545
  %v547 = vpop.f32.mrb[0].mxu0
  %v548 = vadd.f32 %v106, %v547
  %v549 = vpop.f32.mrb[0].mxu0
  %v550 = vadd.f32 %v106, %v549
  %551 = vmatprep.mubr.bf16.mxu0 0
  %552 = vmatmul.mubr.bf16.gmra.mrb[0].mxu0 %v242
  %v553 = vpop.f32.mrb[0].mxu0
  %v554 = vadd.f32 %v111, %v553
  %v555 = vpop.f32.mrb[0].mxu0
  %v556 = vadd.f32 %v111, %v555
  %v557 = vpop.f32.mrb[0].mxu0
  %v558 = vadd.f32 %v116, %v557
  %v559 = vpop.f32.mrb[0].mxu0
  %v560 = vadd.f32 %v116, %v559
  %561 = vmatprep.mubr.bf16.mxu0 0
  %562 = vmatmul.mubr.bf16.gmra.mrb[0].mxu0 %v245
  %v563 = vpop.f32.mrb[0].mxu0
  %v564 = vadd.f32 %v121, %v563
  %v565 = vpop.f32.mrb[0].mxu0
  %v566 = vadd.f32 %v121, %v565
  %v567 = vpop.f32.mrb[0].mxu0
  %v568 = vadd.f32 %v126, %v567
  %v569 = vpop.f32.mrb[0].mxu0
  %v570 = vadd.f32 %v126, %v569
  %571 = vmatprep.mubr.bf16.mxu0 0
  %572 = vmatmul.mubr.bf16.gmra.mrb[0].mxu0 %v248
  %v573 = vpop.f32.mrb[0].mxu0
  %v574 = vadd.f32 %v131, %v573
  %v575 = vpop.f32.mrb[0].mxu0
  %v576 = vadd.f32 %v131, %v575
  %v577 = vpop.f32.mrb[0].mxu0
  %v578 = vadd.f32 %v136, %v577
  %v579 = vpop.f32.mrb[0].mxu0
  %v580 = vadd.f32 %v136, %v579
  %581 = vmatprep.mubr.bf16.mxu0 0
  %582 = vmatmul.mubr.bf16.gmra.mrb[0].mxu0 %v251
  %v583 = vpop.f32.mrb[0].mxu0
  %v584 = vadd.f32 %v141, %v583
  %v585 = vpop.f32.mrb[0].mxu0
  %v586 = vadd.f32 %v141, %v585
  %v587 = vpop.f32.mrb[0].mxu0
  %v588 = vadd.f32 %v146, %v587
  %v589 = vpop.f32.mrb[0].mxu0
  %v590 = vadd.f32 %v146, %v589
  %591 = vdwg.mxu0
  %592 = vmatprep.subr.bf16.mxu0 %v219
  %593 = vmatpush1.bf16.msra.mxu0 %v218
  %594 = vmatprep.subr.bf16.mxu0 0
  %595 = vmatpush1.bf16.msra.mxu0 0
  %596 = vmatprep.subr.bf16.mxu0 0
  %597 = vmatpush1.bf16.msra.mxu0 0
  %598 = vmatprep.subr.bf16.mxu0 0
  %599 = vmatpush1.bf16.msra.mxu0 0
  %600 = vmatprep.subr.bf16.mxu0 0
  %601 = vmatpush1.bf16.msra.mxu0 0
  %602 = vmatprep.subr.bf16.mxu0 0
  %603 = vmatpush1.bf16.msra.mxu0 0
  %604 = vmatprep.subr.bf16.mxu0 0
  %605 = vmatpush1.bf16.msra.mxu0 0
  %606 = vmatprep.subr.bf16.mxu0 0
  %607 = vmatpush1.bf16.msra.mxu0 0
  %608 = vmatprep.subr.bf16.mxu0 0
  %609 = vmatpush1.bf16.msra.mxu0 0
  %610 = vmatprep.subr.bf16.mxu0 0
  %611 = vmatpush1.bf16.msra.mxu0 0
  %612 = vmatprep.subr.bf16.mxu0 0
  %613 = vmatpush1.bf16.msra.mxu0 0
  %614 = vmatprep.subr.bf16.mxu0 0
  %615 = vmatpush1.bf16.msra.mxu0 0
  %616 = vmatprep.subr.bf16.mxu0 0
  %617 = vmatpush1.bf16.msra.mxu0 0
  %618 = vmatprep.subr.bf16.mxu0 0
  %619 = vmatpush1.bf16.msra.mxu0 0
  %620 = vmatprep.subr.bf16.mxu0 0
  %621 = vmatpush1.bf16.msra.mxu0 0
  %622 = vmatprep.subr.bf16.mxu0 0
  %623 = vmatpush1.bf16.msra.mxu0 0
  %624 = vmatprep.mubr.bf16.mxu0 0
  %625 = vmatmul.mubr.bf16.gmra.mrb[0].mxu0 %v230
  %v626 = vpop.f32.mrb[0].mxu0
  %v627 = vadd.f32 %v71, %v626
  %v628 = vpop.f32.mrb[0].mxu0
  %v629 = vadd.f32 %v71, %v628
  %v630 = vpop.f32.mrb[0].mxu0
  %v631 = vadd.f32 %v76, %v630
  %v632 = vpop.f32.mrb[0].mxu0
  %v633 = vadd.f32 %v76, %v632
  %634 = vmatprep.mubr.bf16.mxu0 0
  %635 = vmatmul.mubr.bf16.gmra.mrb[0].mxu0 %v233
  %v636 = vpop.f32.mrb[0].mxu0
  %v637 = vadd.f32 %v81, %v636
  %v638 = vpop.f32.mrb[0].mxu0
  %v639 = vadd.f32 %v81, %v638
  %v640 = vpop.f32.mrb[0].mxu0
  %v641 = vadd.f32 %v86, %v640
  %v642 = vpop.f32.mrb[0].mxu0
  %v643 = vadd.f32 %v86, %v642
  %644 = vmatprep.mubr.bf16.mxu0 0
  %645 = vmatmul.mubr.bf16.gmra.mrb[0].mxu0 %v236
  %v646 = vpop.f32.mrb[0].mxu0
  %v647 = vadd.f32 %v91, %v646
  %v648 = vpop.f32.mrb[0].mxu0
  %v649 = vadd.f32 %v91, %v648
  %v650 = vpop.f32.mrb[0].mxu0
  %v651 = vadd.f32 %v96, %v650
  %v652 = vpop.f32.mrb[0].mxu0
  %v653 = vadd.f32 %v96, %v652
  %654 = vmatprep.mubr.bf16.mxu0 0
  %655 = vmatmul.mubr.bf16.gmra.mrb[0].mxu0 %v239
  %v656 = vpop.f32.mrb[0].mxu0
  %v657 = vadd.f32 %v101, %v656
  %v658 = vpop.f32.mrb[0].mxu0
  %v659 = vadd.f32 %v101, %v658
  %v660 = vpop.f32.mrb[0].mxu0
  %v661 = vadd.f32 %v106, %v660
  %v662 = vpop.f32.mrb[0].mxu0
  %v663 = vadd.f32 %v106, %v662
  %664 = vmatprep.mubr.bf16.mxu0 0
  %665 = vmatmul.mubr.bf16.gmra.mrb[0].mxu0 %v242
  %v666 = vpop.f32.mrb[0].mxu0
  %v667 = vadd.f32 %v111, %v666
  %v668 = vpop.f32.mrb[0].mxu0
  %v669 = vadd.f32 %v111, %v668
  %v670 = vpop.f32.mrb[0].mxu0
  %v671 = vadd.f32 %v116, %v670
  %v672 = vpop.f32.mrb[0].mxu0
  %v673 = vadd.f32 %v116, %v672
  %674 = vmatprep.mubr.bf16.mxu0 0
  %675 = vmatmul.mubr.bf16.gmra.mrb[0].mxu0 %v245
  %v676 = vpop.f32.mrb[0].mxu0
  %v677 = vadd.f32 %v121, %v676
  %v678 = vpop.f32.mrb[0].mxu0
  %v679 = vadd.f32 %v121, %v678
  %v680 = vpop.f32.mrb[0].mxu0
  %v681 = vadd.f32 %v126, %v680
  %v682 = vpop.f32.mrb[0].mxu0
  %v683 = vadd.f32 %v126, %v682
  %684 = vmatprep.mubr.bf16.mxu0 0
  %685 = vmatmul.mubr.bf16.gmra.mrb[0].mxu0 %v248
  %v686 = vpop.f32.mrb[0].mxu0
  %v687 = vadd.f32 %v131, %v686
  %v688 = vpop.f32.mrb[0].mxu0
  %v689 = vadd.f32 %v131, %v688
  %v690 = vpop.f32.mrb[0].mxu0
  %v691 = vadd.f32 %v136, %v690
  %v692 = vpop.f32.mrb[0].mxu0
  %v693 = vadd.f32 %v136, %v692
  %694 = vmatprep.mubr.bf16.mxu0 0
  %695 = vmatmul.mubr.bf16.gmra.mrb[0].mxu0 %v251
  %v696 = vpop.f32.mrb[0].mxu0
  %v697 = vadd.f32 %v141, %v696
  %v698 = vpop.f32.mrb[0].mxu0
  %v699 = vadd.f32 %v141, %v698
  %v700 = vpop.f32.mrb[0].mxu0
  %v701 = vadd.f32 %v146, %v700
  %v702 = vpop.f32.mrb[0].mxu0
  %v703 = vadd.f32 %v146, %v702
  %704 = vdwg.mxu0
  %v705 = vmax.f32 %v288, 0.0
  %v706 = vmax.f32 %v290, 0.0
  %v707 = vmax.f32 %v401, 0.0
  %v708 = vmax.f32 %v403, 0.0
  %v709 = vmax.f32 %v514, 0.0
  %v710 = vmax.f32 %v516, 0.0
  %v711 = vmax.f32 %v627, 0.0
  %v712 = vmax.f32 %v629, 0.0
  %v713 = vmax.f32 %v292, 0.0
  %v714 = vmax.f32 %v294, 0.0
  %v715 = vmax.f32 %v405, 0.0
  %v716 = vmax.f32 %v407, 0.0
  %v717 = vmax.f32 %v518, 0.0
  %v718 = vmax.f32 %v520, 0.0
  %v719 = vmax.f32 %v631, 0.0
  %v720 = vmax.f32 %v633, 0.0
  %v721 = vmax.f32 %v298, 0.0
  %v722 = vmax.f32 %v300, 0.0
  %v723 = vmax.f32 %v411, 0.0
  %v724 = vmax.f32 %v413, 0.0
  %v725 = vmax.f32 %v524, 0.0
  %v726 = vmax.f32 %v526, 0.0
  %v727 = vmax.f32 %v637, 0.0
  %v728 = vmax.f32 %v639, 0.0
  %v729 = vmax.f32 %v302, 0.0
  %v730 = vmax.f32 %v304, 0.0
  %v731 = vmax.f32 %v415, 0.0
  %v732 = vmax.f32 %v417, 0.0
  %v733 = vmax.f32 %v528, 0.0
  %v734 = vmax.f32 %v530, 0.0
  %v735 = vmax.f32 %v641, 0.0
  %v736 = vmax.f32 %v643, 0.0
  %v737 = vmax.f32 %v308, 0.0
  %v738 = vmax.f32 %v310, 0.0
  %v739 = vmax.f32 %v421, 0.0
  %v740 = vmax.f32 %v423, 0.0
  %v741 = vmax.f32 %v534, 0.0
  %v742 = vmax.f32 %v536, 0.0
  %v743 = vmax.f32 %v647, 0.0
  %v744 = vmax.f32 %v649, 0.0
  %v745 = vmax.f32 %v312, 0.0
  %v746 = vmax.f32 %v314, 0.0
  %v747 = vmax.f32 %v425, 0.0
  %v748 = vmax.f32 %v427, 0.0
  %v749 = vmax.f32 %v538, 0.0
  %v750 = vmax.f32 %v540, 0.0
  %v751 = vmax.f32 %v651, 0.0
  %v752 = vmax.f32 %v653, 0.0
  %v753 = vmax.f32 %v318, 0.0
  %v754 = vmax.f32 %v320, 0.0
  %v755 = vmax.f32 %v431, 0.0
  %v756 = vmax.f32 %v433, 0.0
  %v757 = vmax.f32 %v544, 0.0
  %v758 = vmax.f32 %v546, 0.0
  %v759 = vmax.f32 %v657, 0.0
  %v760 = vmax.f32 %v659, 0.0
  %v761 = vmax.f32 %v322, 0.0
  %v762 = vmax.f32 %v324, 0.0
  %v763 = vmax.f32 %v435, 0.0
  %v764 = vmax.f32 %v437, 0.0
  %v765 = vmax.f32 %v548, 0.0
  %v766 = vmax.f32 %v550, 0.0
  %v767 = vmax.f32 %v661, 0.0
  %v768 = vmax.f32 %v663, 0.0
  %v769 = vmax.f32 %v328, 0.0
  %v770 = vmax.f32 %v330, 0.0
  %v771 = vmax.f32 %v441, 0.0
  %v772 = vmax.f32 %v443, 0.0
  %v773 = vmax.f32 %v554, 0.0
  %v774 = vmax.f32 %v556, 0.0
  %v775 = vmax.f32 %v667, 0.0
  %v776 = vmax.f32 %v669, 0.0
  %v777 = vmax.f32 %v332, 0.0
  %v778 = vmax.f32 %v334, 0.0
  %v779 = vmax.f32 %v445, 0.0
  %v780 = vmax.f32 %v447, 0.0
  %v781 = vmax.f32 %v558, 0.0
  %v782 = vmax.f32 %v560, 0.0
  %v783 = vmax.f32 %v671, 0.0
  %v784 = vmax.f32 %v673, 0.0
  %v785 = vmax.f32 %v338, 0.0
  %v786 = vmax.f32 %v340, 0.0
  %v787 = vmax.f32 %v451, 0.0
  %v788 = vmax.f32 %v453, 0.0
  %v789 = vmax.f32 %v564, 0.0
  %v790 = vmax.f32 %v566, 0.0
  %v791 = vmax.f32 %v677, 0.0
  %v792 = vmax.f32 %v679, 0.0
  %v793 = vmax.f32 %v342, 0.0
  %v794 = vmax.f32 %v344, 0.0
  %v795 = vmax.f32 %v455, 0.0
  %v796 = vmax.f32 %v457, 0.0
  %v797 = vmax.f32 %v568, 0.0
  %v798 = vmax.f32 %v570, 0.0
  %v799 = vmax.f32 %v681, 0.0
  %v800 = vmax.f32 %v683, 0.0
  %v801 = vmax.f32 %v348, 0.0
  %v802 = vmax.f32 %v350, 0.0
  %v803 = vmax.f32 %v461, 0.0
  %v804 = vmax.f32 %v463, 0.0
  %v805 = vmax.f32 %v574, 0.0
  %v806 = vmax.f32 %v576, 0.0
  %v807 = vmax.f32 %v687, 0.0
  %v808 = vmax.f32 %v689, 0.0
  %v809 = vmax.f32 %v352, 0.0
  %v810 = vmax.f32 %v354, 0.0
  %v811 = vmax.f32 %v465, 0.0
  %v812 = vmax.f32 %v467, 0.0
  %v813 = vmax.f32 %v578, 0.0
  %v814 = vmax.f32 %v580, 0.0
  %v815 = vmax.f32 %v691, 0.0
  %v816 = vmax.f32 %v693, 0.0
  %v817 = vmax.f32 %v358, 0.0
  %v818 = vmax.f32 %v360, 0.0
  %v819 = vmax.f32 %v471, 0.0
  %v820 = vmax.f32 %v473, 0.0
  %v821 = vmax.f32 %v584, 0.0
  %v822 = vmax.f32 %v586, 0.0
  %v823 = vmax.f32 %v697, 0.0
  %v824 = vmax.f32 %v699, 0.0
  %v825 = vmax.f32 %v362, 0.0
  %v826 = vmax.f32 %v364, 0.0
  %v827 = vmax.f32 %v475, 0.0
  %v828 = vmax.f32 %v477, 0.0
  %v829 = vmax.f32 %v588, 0.0
  %v830 = vmax.f32 %v590, 0.0
  %v831 = vmax.f32 %v701, 0.0
  %v832 = vmax.f32 %v703, 0.0
  %v833 = vld [vmem:[%s3] sm:$0xf]
  %v834 = vld [vmem:[%s3 + $0x4] sm:$0xf]
  %v835 = vld [vmem:[%s3 + $0x8] sm:$0xf]
  %v836 = vld [vmem:[%s3 + $0xc] sm:$0xf]
  %v837 = vld [vmem:[%s3 + $0x10] sm:$0xf]
  %v838 = vld [vmem:[%s3 + $0x14] sm:$0xf]
  %v839 = vld [vmem:[%s3 + $0x18] sm:$0xf]
  %v840 = vld [vmem:[%s3 + $0x1c] sm:$0xf]
  %v841 = vld [vmem:[%s3 + $0x20] sm:$0xf]
  %v842 = vld [vmem:[%s3 + $0x24] sm:$0xf]
  %v843 = vld [vmem:[%s3 + $0x28] sm:$0xf]
  %v844 = vld [vmem:[%s3 + $0x2c] sm:$0xf]
  %v845 = vld [vmem:[%s3 + $0x30] sm:$0xf]
  %v846 = vld [vmem:[%s3 + $0x34] sm:$0xf]
  %v847 = vld [vmem:[%s3 + $0x38] sm:$0xf]
  %v848 = vld [vmem:[%s3 + $0x3c] sm:$0xf]
  %v849 = vpack.c.bf16 %v713, %v705
  %v850 = vpack.c.bf16 %v714, %v706
  %v851 = vpack.c.bf16 %v715, %v707
  %v852 = vpack.c.bf16 %v716, %v708
  %v853 = vpack.c.bf16 %v717, %v709
  %v854 = vpack.c.bf16 %v718, %v710
  %v855 = vpack.c.bf16 %v719, %v711
  %v856 = vpack.c.bf16 %v720, %v712
  %v857 = vpack.c.bf16 %v729, %v721
  %v858 = vpack.c.bf16 %v730, %v722
  %v859 = vpack.c.bf16 %v731, %v723
  %v860 = vpack.c.bf16 %v732, %v724
  %v861 = vpack.c.bf16 %v733, %v725
  %v862 = vpack.c.bf16 %v734, %v726
  %v863 = vpack.c.bf16 %v735, %v727
  %v864 = vpack.c.bf16 %v736, %v728
  %v865 = vpack.c.bf16 %v745, %v737
  %v866 = vpack.c.bf16 %v746, %v738
  %v867 = vpack.c.bf16 %v747, %v739
  %v868 = vpack.c.bf16 %v748, %v740
  %v869 = vpack.c.bf16 %v749, %v741
  %v870 = vpack.c.bf16 %v750, %v742
  %v871 = vpack.c.bf16 %v751, %v743
  %v872 = vpack.c.bf16 %v752, %v744
  %v873 = vpack.c.bf16 %v761, %v753
  %v874 = vpack.c.bf16 %v762, %v754
  %v875 = vpack.c.bf16 %v763, %v755
  %v876 = vpack.c.bf16 %v764, %v756
  %v877 = vpack.c.bf16 %v765, %v757
  %v878 = vpack.c.bf16 %v766, %v758
  %v879 = vpack.c.bf16 %v767, %v759
  %v880 = vpack.c.bf16 %v768, %v760
  %v881 = vpack.c.bf16 %v777, %v769
  %v882 = vpack.c.bf16 %v778, %v770
  %v883 = vpack.c.bf16 %v779, %v771
  %v884 = vpack.c.bf16 %v780, %v772
  %v885 = vpack.c.bf16 %v781, %v773
  %v886 = vpack.c.bf16 %v782, %v774
  %v887 = vpack.c.bf16 %v783, %v775
  %v888 = vpack.c.bf16 %v784, %v776
  %v889 = vpack.c.bf16 %v793, %v785
  %v890 = vpack.c.bf16 %v794, %v786
  %v891 = vpack.c.bf16 %v795, %v787
  %v892 = vpack.c.bf16 %v796, %v788
  %v893 = vpack.c.bf16 %v797, %v789
  %v894 = vpack.c.bf16 %v798, %v790
  %v895 = vpack.c.bf16 %v799, %v791
  %v896 = vpack.c.bf16 %v800, %v792
  %v897 = vpack.c.bf16 %v809, %v801
  %v898 = vpack.c.bf16 %v810, %v802
  %v899 = vpack.c.bf16 %v811, %v803
  %v900 = vpack.c.bf16 %v812, %v804
  %v901 = vpack.c.bf16 %v813, %v805
  %v902 = vpack.c.bf16 %v814, %v806
  %v903 = vpack.c.bf16 %v815, %v807
  %v904 = vpack.c.bf16 %v816, %v808
  %v905 = vpack.c.bf16 %v825, %v817
  %v906 = vpack.c.bf16 %v826, %v818
  %v907 = vpack.c.bf16 %v827, %v819
  %v908 = vpack.c.bf16 %v828, %v820
  %v909 = vpack.c.bf16 %v829, %v821
  %v910 = vpack.c.bf16 %v830, %v822
  %v911 = vpack.c.bf16 %v831, %v823
  %v912 = vpack.c.bf16 %v832, %v824
  %v913 = vld [vmem:[%s4] sm:$0xff]
  %v914 = vld [vmem:[%s4 + $0x8] sm:$0xff]
  %v915 = vld [vmem:[%s4 + $0x10] sm:$0xff]
  %v916 = vld [vmem:[%s4 + $0x18] sm:$0xff]
  %v917 = vld [vmem:[%s4 + $0x20] sm:$0xff]
  %v918 = vld [vmem:[%s4 + $0x28] sm:$0xff]
  %v919 = vld [vmem:[%s4 + $0x30] sm:$0xff]
  %v920 = vld [vmem:[%s4 + $0x38] sm:$0xff]
  %v921 = vld [vmem:[%s4 + $0x40] sm:$0xff]
  %v922 = vld [vmem:[%s4 + $0x48] sm:$0xff]
  %v923 = vld [vmem:[%s4 + $0x50] sm:$0xff]
  %v924 = vld [vmem:[%s4 + $0x58] sm:$0xff]
  %v925 = vld [vmem:[%s4 + $0x60] sm:$0xff]
  %v926 = vld [vmem:[%s4 + $0x68] sm:$0xff]
  %v927 = vld [vmem:[%s4 + $0x70] sm:$0xff]
  %v928 = vld [vmem:[%s4 + $0x78] sm:$0xff]
  %930 = vset.pattern.permute.xlu0 0
  %931 = vperm.xlu0 %930, %v913
  %v932 = vpop.permute.xlu0 %931
  %935 = vset.pattern.permute.xlu0 0
  %936 = vperm.xlu0 %935, %v914
  %v937 = vpop.permute.xlu0 %936
  %940 = vset.pattern.permute.xlu0 0
  %941 = vperm.xlu0 %940, %v915
  %v942 = vpop.permute.xlu0 %941
  %945 = vset.pattern.permute.xlu0 0
  %946 = vperm.xlu0 %945, %v916
  %v947 = vpop.permute.xlu0 %946
  %950 = vset.pattern.permute.xlu0 0
  %951 = vperm.xlu0 %950, %v917
  %v952 = vpop.permute.xlu0 %951
  %955 = vset.pattern.permute.xlu0 0
  %956 = vperm.xlu0 %955, %v918
  %v957 = vpop.permute.xlu0 %956
  %960 = vset.pattern.permute.xlu0 0
  %961 = vperm.xlu0 %960, %v919
  %v962 = vpop.permute.xlu0 %961
  %965 = vset.pattern.permute.xlu0 0
  %966 = vperm.xlu0 %965, %v920
  %v967 = vpop.permute.xlu0 %966
  %970 = vset.pattern.permute.xlu0 0
  %971 = vperm.xlu0 %970, %v921
  %v972 = vpop.permute.xlu0 %971
  %975 = vset.pattern.permute.xlu0 0
  %976 = vperm.xlu0 %975, %v922
  %v977 = vpop.permute.xlu0 %976
  %980 = vset.pattern.permute.xlu0 0
  %981 = vperm.xlu0 %980, %v923
  %v982 = vpop.permute.xlu0 %981
  %985 = vset.pattern.permute.xlu0 0
  %986 = vperm.xlu0 %985, %v924
  %v987 = vpop.permute.xlu0 %986
  %990 = vset.pattern.permute.xlu0 0
  %991 = vperm.xlu0 %990, %v925
  %v992 = vpop.permute.xlu0 %991
  %995 = vset.pattern.permute.xlu0 0
  %996 = vperm.xlu0 %995, %v926
  %v997 = vpop.permute.xlu0 %996
  %1000 = vset.pattern.permute.xlu0 0
  %1001 = vperm.xlu0 %1000, %v927
  %v1002 = vpop.permute.xlu0 %1001
  %1005 = vset.pattern.permute.xlu0 0
  %1006 = vperm.xlu0 %1005, %v928
  %v1007 = vpop.permute.xlu0 %1006
  %v1025 = vunpack.c.l.b16 %v833
  %v1026 = vunpack.c.l.b16 %v834
  %v1027 = vunpack.c.l.b16 %v835
  %v1028 = vunpack.c.l.b16 %v836
  %v1029 = vunpack.c.l.b16 %v837
  %v1030 = vunpack.c.l.b16 %v838
  %v1031 = vunpack.c.l.b16 %v839
  %v1032 = vunpack.c.l.b16 %v840
  %v1033 = vunpack.c.l.b16 %v841
  %v1034 = vunpack.c.l.b16 %v842
  %v1035 = vunpack.c.l.b16 %v843
  %v1036 = vunpack.c.l.b16 %v844
  %v1037 = vunpack.c.l.b16 %v845
  %v1038 = vunpack.c.l.b16 %v846
  %v1039 = vunpack.c.l.b16 %v847
  %v1040 = vunpack.c.l.b16 %v848
  %v1041 = vpack.c.b16 %v1026, %v1025
  %v1042 = vpack.c.b16 %v1028, %v1027
  %v1043 = vpack.c.b16 %v1030, %v1029
  %v1044 = vpack.c.b16 %v1032, %v1031
  %v1045 = vpack.c.b16 %v1034, %v1033
  %v1046 = vpack.c.b16 %v1036, %v1035
  %v1047 = vpack.c.b16 %v1038, %v1037
  %v1048 = vpack.c.b16 %v1040, %v1039
  %1057 = vmatprep.subr.bf16.mxu0 %v850
  %1058 = vmatpush1.bf16.msra.mxu0 %v849
  %1059 = vmatprep.subr.bf16.mxu0 %v858
  %1060 = vmatpush1.bf16.msra.mxu0 %v857
  %1061 = vmatprep.subr.bf16.mxu0 %v866
  %1062 = vmatpush1.bf16.msra.mxu0 %v865
  %1063 = vmatprep.subr.bf16.mxu0 %v874
  %1064 = vmatpush1.bf16.msra.mxu0 %v873
  %1065 = vmatprep.subr.bf16.mxu0 %v882
  %1066 = vmatpush1.bf16.msra.mxu0 %v881
  %1067 = vmatprep.subr.bf16.mxu0 %v890
  %1068 = vmatpush1.bf16.msra.mxu0 %v889
  %1069 = vmatprep.subr.bf16.mxu0 %v898
  %1070 = vmatpush1.bf16.msra.mxu0 %v897
  %1071 = vmatprep.subr.bf16.mxu0 %v906
  %1072 = vmatpush1.bf16.msra.mxu0 %v905
  %1073 = vmatprep.subr.bf16.mxu0 0
  %1074 = vmatpush1.bf16.msra.mxu0 0
  %1075 = vmatprep.subr.bf16.mxu0 0
  %1076 = vmatpush1.bf16.msra.mxu0 0
  %1077 = vmatprep.subr.bf16.mxu0 0
  %1078 = vmatpush1.bf16.msra.mxu0 0
  %1079 = vmatprep.subr.bf16.mxu0 0
  %1080 = vmatpush1.bf16.msra.mxu0 0
  %1081 = vmatprep.subr.bf16.mxu0 0
  %1082 = vmatpush1.bf16.msra.mxu0 0
  %1083 = vmatprep.subr.bf16.mxu0 0
  %1084 = vmatpush1.bf16.msra.mxu0 0
  %1085 = vmatprep.subr.bf16.mxu0 0
  %1086 = vmatpush1.bf16.msra.mxu0 0
  %1087 = vmatprep.subr.bf16.mxu0 0
  %1088 = vmatpush1.bf16.msra.mxu0 0
  %1089 = vmatprep.mubr.bf16.mxu0 0
  %1090 = vmatmul.mubr.bf16.gmra.mrb[0].mxu0 %v1041
  %v1091 = vpop.f32.mrb[0].mxu0
  %v1092 = vadd.f32 %v932, %v1091
  %v1093 = vpop.f32.mrb[0].mxu0
  %v1094 = vadd.f32 %v932, %v1093
  %v1095 = vpop.f32.mrb[0].mxu0
  %v1096 = vadd.f32 %v937, %v1095
  %v1097 = vpop.f32.mrb[0].mxu0
  %v1098 = vadd.f32 %v937, %v1097
  %1099 = vmatprep.mubr.bf16.mxu0 0
  %1100 = vmatmul.mubr.bf16.gmra.mrb[0].mxu0 %v1042
  %v1101 = vpop.f32.mrb[0].mxu0
  %v1102 = vadd.f32 %v942, %v1101
  %v1103 = vpop.f32.mrb[0].mxu0
  %v1104 = vadd.f32 %v942, %v1103
  %v1105 = vpop.f32.mrb[0].mxu0
  %v1106 = vadd.f32 %v947, %v1105
  %v1107 = vpop.f32.mrb[0].mxu0
  %v1108 = vadd.f32 %v947, %v1107
  %1109 = vmatprep.mubr.bf16.mxu0 0
  %1110 = vmatmul.mubr.bf16.gmra.mrb[0].mxu0 %v1043
  %v1111 = vpop.f32.mrb[0].mxu0
  %v1112 = vadd.f32 %v952, %v1111
  %v1113 = vpop.f32.mrb[0].mxu0
  %v1114 = vadd.f32 %v952, %v1113
  %v1115 = vpop.f32.mrb[0].mxu0
  %v1116 = vadd.f32 %v957, %v1115
  %v1117 = vpop.f32.mrb[0].mxu0
  %v1118 = vadd.f32 %v957, %v1117
  %1119 = vmatprep.mubr.bf16.mxu0 0
  %1120 = vmatmul.mubr.bf16.gmra.mrb[0].mxu0 %v1044
  %v1121 = vpop.f32.mrb[0].mxu0
  %v1122 = vadd.f32 %v962, %v1121
  %v1123 = vpop.f32.mrb[0].mxu0
  %v1124 = vadd.f32 %v962, %v1123
  %v1125 = vpop.f32.mrb[0].mxu0
  %v1126 = vadd.f32 %v967, %v1125
  %v1127 = vpop.f32.mrb[0].mxu0
  %v1128 = vadd.f32 %v967, %v1127
  %1129 = vmatprep.mubr.bf16.mxu0 0
  %1130 = vmatmul.mubr.bf16.gmra.mrb[0].mxu0 %v1045
  %v1131 = vpop.f32.mrb[0].mxu0
  %v1132 = vadd.f32 %v972, %v1131
  %v1133 = vpop.f32.mrb[0].mxu0
  %v1134 = vadd.f32 %v972, %v1133
  %v1135 = vpop.f32.mrb[0].mxu0
  %v1136 = vadd.f32 %v977, %v1135
  %v1137 = vpop.f32.mrb[0].mxu0
  %v1138 = vadd.f32 %v977, %v1137
  %1139 = vmatprep.mubr.bf16.mxu0 0
  %1140 = vmatmul.mubr.bf16.gmra.mrb[0].mxu0 %v1046
  %v1141 = vpop.f32.mrb[0].mxu0
  %v1142 = vadd.f32 %v982, %v1141
  %v1143 = vpop.f32.mrb[0].mxu0
  %v1144 = vadd.f32 %v982, %v1143
  %v1145 = vpop.f32.mrb[0].mxu0
  %v1146 = vadd.f32 %v987, %v1145
  %v1147 = vpop.f32.mrb[0].mxu0
  %v1148 = vadd.f32 %v987, %v1147
  %1149 = vmatprep.mubr.bf16.mxu0 0
  %1150 = vmatmul.mubr.bf16.gmra.mrb[0].mxu0 %v1047
  %v1151 = vpop.f32.mrb[0].mxu0
  %v1152 = vadd.f32 %v992, %v1151
  %v1153 = vpop.f32.mrb[0].mxu0
  %v1154 = vadd.f32 %v992, %v1153
  %v1155 = vpop.f32.mrb[0].mxu0
  %v1156 = vadd.f32 %v997, %v1155
  %v1157 = vpop.f32.mrb[0].mxu0
  %v1158 = vadd.f32 %v997, %v1157
  %1159 = vmatprep.mubr.bf16.mxu0 0
  %1160 = vmatmul.mubr.bf16.gmra.mrb[0].mxu0 %v1048
  %v1161 = vpop.f32.mrb[0].mxu0
  %v1162 = vadd.f32 %v1002, %v1161
  %v1163 = vpop.f32.mrb[0].mxu0
  %v1164 = vadd.f32 %v1002, %v1163
  %v1165 = vpop.f32.mrb[0].mxu0
  %v1166 = vadd.f32 %v1007, %v1165
  %v1167 = vpop.f32.mrb[0].mxu0
  %v1168 = vadd.f32 %v1007, %v1167
  %1169 = vdwg.mxu0
  %1170 = vmatprep.subr.bf16.mxu0 %v852
  %1171 = vmatpush1.bf16.msra.mxu0 %v851
  %1172 = vmatprep.subr.bf16.mxu0 %v860
  %1173 = vmatpush1.bf16.msra.mxu0 %v859
  %1174 = vmatprep.subr.bf16.mxu0 %v868
  %1175 = vmatpush1.bf16.msra.mxu0 %v867
  %1176 = vmatprep.subr.bf16.mxu0 %v876
  %1177 = vmatpush1.bf16.msra.mxu0 %v875
  %1178 = vmatprep.subr.bf16.mxu0 %v884
  %1179 = vmatpush1.bf16.msra.mxu0 %v883
  %1180 = vmatprep.subr.bf16.mxu0 %v892
  %1181 = vmatpush1.bf16.msra.mxu0 %v891
  %1182 = vmatprep.subr.bf16.mxu0 %v900
  %1183 = vmatpush1.bf16.msra.mxu0 %v899
  %1184 = vmatprep.subr.bf16.mxu0 %v908
  %1185 = vmatpush1.bf16.msra.mxu0 %v907
  %1186 = vmatprep.subr.bf16.mxu0 0
  %1187 = vmatpush1.bf16.msra.mxu0 0
  %1188 = vmatprep.subr.bf16.mxu0 0
  %1189 = vmatpush1.bf16.msra.mxu0 0
  %1190 = vmatprep.subr.bf16.mxu0 0
  %1191 = vmatpush1.bf16.msra.mxu0 0
  %1192 = vmatprep.subr.bf16.mxu0 0
  %1193 = vmatpush1.bf16.msra.mxu0 0
  %1194 = vmatprep.subr.bf16.mxu0 0
  %1195 = vmatpush1.bf16.msra.mxu0 0
  %1196 = vmatprep.subr.bf16.mxu0 0
  %1197 = vmatpush1.bf16.msra.mxu0 0
  %1198 = vmatprep.subr.bf16.mxu0 0
  %1199 = vmatpush1.bf16.msra.mxu0 0
  %1200 = vmatprep.subr.bf16.mxu0 0
  %1201 = vmatpush1.bf16.msra.mxu0 0
  %1202 = vmatprep.mubr.bf16.mxu0 0
  %1203 = vmatmul.mubr.bf16.gmra.mrb[0].mxu0 %v1041
  %v1204 = vpop.f32.mrb[0].mxu0
  %v1205 = vadd.f32 %v932, %v1204
  %v1206 = vpop.f32.mrb[0].mxu0
  %v1207 = vadd.f32 %v932, %v1206
  %v1208 = vpop.f32.mrb[0].mxu0
  %v1209 = vadd.f32 %v937, %v1208
  %v1210 = vpop.f32.mrb[0].mxu0
  %v1211 = vadd.f32 %v937, %v1210
  %1212 = vmatprep.mubr.bf16.mxu0 0
  %1213 = vmatmul.mubr.bf16.gmra.mrb[0].mxu0 %v1042
  %v1214 = vpop.f32.mrb[0].mxu0
  %v1215 = vadd.f32 %v942, %v1214
  %v1216 = vpop.f32.mrb[0].mxu0
  %v1217 = vadd.f32 %v942, %v1216
  %v1218 = vpop.f32.mrb[0].mxu0
  %v1219 = vadd.f32 %v947, %v1218
  %v1220 = vpop.f32.mrb[0].mxu0
  %v1221 = vadd.f32 %v947, %v1220
  %1222 = vmatprep.mubr.bf16.mxu0 0
  %1223 = vmatmul.mubr.bf16.gmra.mrb[0].mxu0 %v1043
  %v1224 = vpop.f32.mrb[0].mxu0
  %v1225 = vadd.f32 %v952, %v1224
  %v1226 = vpop.f32.mrb[0].mxu0
  %v1227 = vadd.f32 %v952, %v1226
  %v1228 = vpop.f32.mrb[0].mxu0
  %v1229 = vadd.f32 %v957, %v1228
  %v1230 = vpop.f32.mrb[0].mxu0
  %v1231 = vadd.f32 %v957, %v1230
  %1232 = vmatprep.mubr.bf16.mxu0 0
  %1233 = vmatmul.mubr.bf16.gmra.mrb[0].mxu0 %v1044
  %v1234 = vpop.f32.mrb[0].mxu0
  %v1235 = vadd.f32 %v962, %v1234
  %v1236 = vpop.f32.mrb[0].mxu0
  %v1237 = vadd.f32 %v962, %v1236
  %v1238 = vpop.f32.mrb[0].mxu0
  %v1239 = vadd.f32 %v967, %v1238
  %v1240 = vpop.f32.mrb[0].mxu0
  %v1241 = vadd.f32 %v967, %v1240
  %1242 = vmatprep.mubr.bf16.mxu0 0
  %1243 = vmatmul.mubr.bf16.gmra.mrb[0].mxu0 %v1045
  %v1244 = vpop.f32.mrb[0].mxu0
  %v1245 = vadd.f32 %v972, %v1244
  %v1246 = vpop.f32.mrb[0].mxu0
  %v1247 = vadd.f32 %v972, %v1246
  %v1248 = vpop.f32.mrb[0].mxu0
  %v1249 = vadd.f32 %v977, %v1248
  %v1250 = vpop.f32.mrb[0].mxu0
  %v1251 = vadd.f32 %v977, %v1250
  %1252 = vmatprep.mubr.bf16.mxu0 0
  %1253 = vmatmul.mubr.bf16.gmra.mrb[0].mxu0 %v1046
  %v1254 = vpop.f32.mrb[0].mxu0
  %v1255 = vadd.f32 %v982, %v1254
  %v1256 = vpop.f32.mrb[0].mxu0
  %v1257 = vadd.f32 %v982, %v1256
  %v1258 = vpop.f32.mrb[0].mxu0
  %v1259 = vadd.f32 %v987, %v1258
  %v1260 = vpop.f32.mrb[0].mxu0
  %v1261 = vadd.f32 %v987, %v1260
  %1262 = vmatprep.mubr.bf16.mxu0 0
  %1263 = vmatmul.mubr.bf16.gmra.mrb[0].mxu0 %v1047
  %v1264 = vpop.f32.mrb[0].mxu0
  %v1265 = vadd.f32 %v992, %v1264
  %v1266 = vpop.f32.mrb[0].mxu0
  %v1267 = vadd.f32 %v992, %v1266
  %v1268 = vpop.f32.mrb[0].mxu0
  %v1269 = vadd.f32 %v997, %v1268
  %v1270 = vpop.f32.mrb[0].mxu0
  %v1271 = vadd.f32 %v997, %v1270
  %1272 = vmatprep.mubr.bf16.mxu0 0
  %1273 = vmatmul.mubr.bf16.gmra.mrb[0].mxu0 %v1048
  %v1274 = vpop.f32.mrb[0].mxu0
  %v1275 = vadd.f32 %v1002, %v1274
  %v1276 = vpop.f32.mrb[0].mxu0
  %v1277 = vadd.f32 %v1002, %v1276
  %v1278 = vpop.f32.mrb[0].mxu0
  %v1279 = vadd.f32 %v1007, %v1278
  %v1280 = vpop.f32.mrb[0].mxu0
  %v1281 = vadd.f32 %v1007, %v1280
  %1282 = vdwg.mxu0
  %1283 = vmatprep.subr.bf16.mxu0 %v854
  %1284 = vmatpush1.bf16.msra.mxu0 %v853
  %1285 = vmatprep.subr.bf16.mxu0 %v862
  %1286 = vmatpush1.bf16.msra.mxu0 %v861
  %1287 = vmatprep.subr.bf16.mxu0 %v870
  %1288 = vmatpush1.bf16.msra.mxu0 %v869
  %1289 = vmatprep.subr.bf16.mxu0 %v878
  %1290 = vmatpush1.bf16.msra.mxu0 %v877
  %1291 = vmatprep.subr.bf16.mxu0 %v886
  %1292 = vmatpush1.bf16.msra.mxu0 %v885
  %1293 = vmatprep.subr.bf16.mxu0 %v894
  %1294 = vmatpush1.bf16.msra.mxu0 %v893
  %1295 = vmatprep.subr.bf16.mxu0 %v902
  %1296 = vmatpush1.bf16.msra.mxu0 %v901
  %1297 = vmatprep.subr.bf16.mxu0 %v910
  %1298 = vmatpush1.bf16.msra.mxu0 %v909
  %1299 = vmatprep.subr.bf16.mxu0 0
  %1300 = vmatpush1.bf16.msra.mxu0 0
  %1301 = vmatprep.subr.bf16.mxu0 0
  %1302 = vmatpush1.bf16.msra.mxu0 0
  %1303 = vmatprep.subr.bf16.mxu0 0
  %1304 = vmatpush1.bf16.msra.mxu0 0
  %1305 = vmatprep.subr.bf16.mxu0 0
  %1306 = vmatpush1.bf16.msra.mxu0 0
  %1307 = vmatprep.subr.bf16.mxu0 0
  %1308 = vmatpush1.bf16.msra.mxu0 0
  %1309 = vmatprep.subr.bf16.mxu0 0
  %1310 = vmatpush1.bf16.msra.mxu0 0
  %1311 = vmatprep.subr.bf16.mxu0 0
  %1312 = vmatpush1.bf16.msra.mxu0 0
  %1313 = vmatprep.subr.bf16.mxu0 0
  %1314 = vmatpush1.bf16.msra.mxu0 0
  %1315 = vmatprep.mubr.bf16.mxu0 0
  %1316 = vmatmul.mubr.bf16.gmra.mrb[0].mxu0 %v1041
  %v1317 = vpop.f32.mrb[0].mxu0
  %v1318 = vadd.f32 %v932, %v1317
  %v1319 = vpop.f32.mrb[0].mxu0
  %v1320 = vadd.f32 %v932, %v1319
  %v1321 = vpop.f32.mrb[0].mxu0
  %v1322 = vadd.f32 %v937, %v1321
  %v1323 = vpop.f32.mrb[0].mxu0
  %v1324 = vadd.f32 %v937, %v1323
  %1325 = vmatprep.mubr.bf16.mxu0 0
  %1326 = vmatmul.mubr.bf16.gmra.mrb[0].mxu0 %v1042
  %v1327 = vpop.f32.mrb[0].mxu0
  %v1328 = vadd.f32 %v942, %v1327
  %v1329 = vpop.f32.mrb[0].mxu0
  %v1330 = vadd.f32 %v942, %v1329
  %v1331 = vpop.f32.mrb[0].mxu0
  %v1332 = vadd.f32 %v947, %v1331
  %v1333 = vpop.f32.mrb[0].mxu0
  %v1334 = vadd.f32 %v947, %v1333
  %1335 = vmatprep.mubr.bf16.mxu0 0
  %1336 = vmatmul.mubr.bf16.gmra.mrb[0].mxu0 %v1043
  %v1337 = vpop.f32.mrb[0].mxu0
  %v1338 = vadd.f32 %v952, %v1337
  %v1339 = vpop.f32.mrb[0].mxu0
  %v1340 = vadd.f32 %v952, %v1339
  %v1341 = vpop.f32.mrb[0].mxu0
  %v1342 = vadd.f32 %v957, %v1341
  %v1343 = vpop.f32.mrb[0].mxu0
  %v1344 = vadd.f32 %v957, %v1343
  %1345 = vmatprep.mubr.bf16.mxu0 0
  %1346 = vmatmul.mubr.bf16.gmra.mrb[0].mxu0 %v1044
  %v1347 = vpop.f32.mrb[0].mxu0
  %v1348 = vadd.f32 %v962, %v1347
  %v1349 = vpop.f32.mrb[0].mxu0
  %v1350 = vadd.f32 %v962, %v1349
  %v1351 = vpop.f32.mrb[0].mxu0
  %v1352 = vadd.f32 %v967, %v1351
  %v1353 = vpop.f32.mrb[0].mxu0
  %v1354 = vadd.f32 %v967, %v1353
  %1355 = vmatprep.mubr.bf16.mxu0 0
  %1356 = vmatmul.mubr.bf16.gmra.mrb[0].mxu0 %v1045
  %v1357 = vpop.f32.mrb[0].mxu0
  %v1358 = vadd.f32 %v972, %v1357
  %v1359 = vpop.f32.mrb[0].mxu0
  %v1360 = vadd.f32 %v972, %v1359
  %v1361 = vpop.f32.mrb[0].mxu0
  %v1362 = vadd.f32 %v977, %v1361
  %v1363 = vpop.f32.mrb[0].mxu0
  %v1364 = vadd.f32 %v977, %v1363
  %1365 = vmatprep.mubr.bf16.mxu0 0
  %1366 = vmatmul.mubr.bf16.gmra.mrb[0].mxu0 %v1046
  %v1367 = vpop.f32.mrb[0].mxu0
  %v1368 = vadd.f32 %v982, %v1367
  %v1369 = vpop.f32.mrb[0].mxu0
  %v1370 = vadd.f32 %v982, %v1369
  %v1371 = vpop.f32.mrb[0].mxu0
  %v1372 = vadd.f32 %v987, %v1371
  %v1373 = vpop.f32.mrb[0].mxu0
  %v1374 = vadd.f32 %v987, %v1373
  %1375 = vmatprep.mubr.bf16.mxu0 0
  %1376 = vmatmul.mubr.bf16.gmra.mrb[0].mxu0 %v1047
  %v1377 = vpop.f32.mrb[0].mxu0
  %v1378 = vadd.f32 %v992, %v1377
  %v1379 = vpop.f32.mrb[0].mxu0
  %v1380 = vadd.f32 %v992, %v1379
  %v1381 = vpop.f32.mrb[0].mxu0
  %v1382 = vadd.f32 %v997, %v1381
  %v1383 = vpop.f32.mrb[0].mxu0
  %v1384 = vadd.f32 %v997, %v1383
  %1385 = vmatprep.mubr.bf16.mxu0 0
  %1386 = vmatmul.mubr.bf16.gmra.mrb[0].mxu0 %v1048
  %v1387 = vpop.f32.mrb[0].mxu0
  %v1388 = vadd.f32 %v1002, %v1387
  %v1389 = vpop.f32.mrb[0].mxu0
  %v1390 = vadd.f32 %v1002, %v1389
  %v1391 = vpop.f32.mrb[0].mxu0
  %v1392 = vadd.f32 %v1007, %v1391
  %v1393 = vpop.f32.mrb[0].mxu0
  %v1394 = vadd.f32 %v1007, %v1393
  %1395 = vdwg.mxu0
  %1396 = vmatprep.subr.bf16.mxu0 %v856
  %1397 = vmatpush1.bf16.msra.mxu0 %v855
  %1398 = vmatprep.subr.bf16.mxu0 %v864
  %1399 = vmatpush1.bf16.msra.mxu0 %v863
  %1400 = vmatprep.subr.bf16.mxu0 %v872
  %1401 = vmatpush1.bf16.msra.mxu0 %v871
  %1402 = vmatprep.subr.bf16.mxu0 %v880
  %1403 = vmatpush1.bf16.msra.mxu0 %v879
  %1404 = vmatprep.subr.bf16.mxu0 %v888
  %1405 = vmatpush1.bf16.msra.mxu0 %v887
  %1406 = vmatprep.subr.bf16.mxu0 %v896
  %1407 = vmatpush1.bf16.msra.mxu0 %v895
  %1408 = vmatprep.subr.bf16.mxu0 %v904
  %1409 = vmatpush1.bf16.msra.mxu0 %v903
  %1410 = vmatprep.subr.bf16.mxu0 %v912
  %1411 = vmatpush1.bf16.msra.mxu0 %v911
  %1412 = vmatprep.subr.bf16.mxu0 0
  %1413 = vmatpush1.bf16.msra.mxu0 0
  %1414 = vmatprep.subr.bf16.mxu0 0
  %1415 = vmatpush1.bf16.msra.mxu0 0
  %1416 = vmatprep.subr.bf16.mxu0 0
  %1417 = vmatpush1.bf16.msra.mxu0 0
  %1418 = vmatprep.subr.bf16.mxu0 0
  %1419 = vmatpush1.bf16.msra.mxu0 0
  %1420 = vmatprep.subr.bf16.mxu0 0
  %1421 = vmatpush1.bf16.msra.mxu0 0
  %1422 = vmatprep.subr.bf16.mxu0 0
  %1423 = vmatpush1.bf16.msra.mxu0 0
  %1424 = vmatprep.subr.bf16.mxu0 0
  %1425 = vmatpush1.bf16.msra.mxu0 0
  %1426 = vmatprep.subr.bf16.mxu0 0
  %1427 = vmatpush1.bf16.msra.mxu0 0
  %1428 = vmatprep.mubr.bf16.mxu0 0
  %1429 = vmatmul.mubr.bf16.gmra.mrb[0].mxu0 %v1041
  %v1430 = vpop.f32.mrb[0].mxu0
  %v1431 = vadd.f32 %v932, %v1430
  %v1432 = vpop.f32.mrb[0].mxu0
  %v1433 = vadd.f32 %v932, %v1432
  %v1434 = vpop.f32.mrb[0].mxu0
  %v1435 = vadd.f32 %v937, %v1434
  %v1436 = vpop.f32.mrb[0].mxu0
  %v1437 = vadd.f32 %v937, %v1436
  %1438 = vmatprep.mubr.bf16.mxu0 0
  %1439 = vmatmul.mubr.bf16.gmra.mrb[0].mxu0 %v1042
  %v1440 = vpop.f32.mrb[0].mxu0
  %v1441 = vadd.f32 %v942, %v1440
  %v1442 = vpop.f32.mrb[0].mxu0
  %v1443 = vadd.f32 %v942, %v1442
  %v1444 = vpop.f32.mrb[0].mxu0
  %v1445 = vadd.f32 %v947, %v1444
  %v1446 = vpop.f32.mrb[0].mxu0
  %v1447 = vadd.f32 %v947, %v1446
  %1448 = vmatprep.mubr.bf16.mxu0 0
  %1449 = vmatmul.mubr.bf16.gmra.mrb[0].mxu0 %v1043
  %v1450 = vpop.f32.mrb[0].mxu0
  %v1451 = vadd.f32 %v952, %v1450
  %v1452 = vpop.f32.mrb[0].mxu0
  %v1453 = vadd.f32 %v952, %v1452
  %v1454 = vpop.f32.mrb[0].mxu0
  %v1455 = vadd.f32 %v957, %v1454
  %v1456 = vpop.f32.mrb[0].mxu0
  %v1457 = vadd.f32 %v957, %v1456
  %1458 = vmatprep.mubr.bf16.mxu0 0
  %1459 = vmatmul.mubr.bf16.gmra.mrb[0].mxu0 %v1044
  %v1460 = vpop.f32.mrb[0].mxu0
  %v1461 = vadd.f32 %v962, %v1460
  %v1462 = vpop.f32.mrb[0].mxu0
  %v1463 = vadd.f32 %v962, %v1462
  %v1464 = vpop.f32.mrb[0].mxu0
  %v1465 = vadd.f32 %v967, %v1464
  %v1466 = vpop.f32.mrb[0].mxu0
  %v1467 = vadd.f32 %v967, %v1466
  %1468 = vmatprep.mubr.bf16.mxu0 0
  %1469 = vmatmul.mubr.bf16.gmra.mrb[0].mxu0 %v1045
  %v1470 = vpop.f32.mrb[0].mxu0
  %v1471 = vadd.f32 %v972, %v1470
  %v1472 = vpop.f32.mrb[0].mxu0
  %v1473 = vadd.f32 %v972, %v1472
  %v1474 = vpop.f32.mrb[0].mxu0
  %v1475 = vadd.f32 %v977, %v1474
  %v1476 = vpop.f32.mrb[0].mxu0
  %v1477 = vadd.f32 %v977, %v1476
  %1478 = vmatprep.mubr.bf16.mxu0 0
  %1479 = vmatmul.mubr.bf16.gmra.mrb[0].mxu0 %v1046
  %v1480 = vpop.f32.mrb[0].mxu0
  %v1481 = vadd.f32 %v982, %v1480
  %v1482 = vpop.f32.mrb[0].mxu0
  %v1483 = vadd.f32 %v982, %v1482
  %v1484 = vpop.f32.mrb[0].mxu0
  %v1485 = vadd.f32 %v987, %v1484
  %v1486 = vpop.f32.mrb[0].mxu0
  %v1487 = vadd.f32 %v987, %v1486
  %1488 = vmatprep.mubr.bf16.mxu0 0
  %1489 = vmatmul.mubr.bf16.gmra.mrb[0].mxu0 %v1047
  %v1490 = vpop.f32.mrb[0].mxu0
  %v1491 = vadd.f32 %v992, %v1490
  %v1492 = vpop.f32.mrb[0].mxu0
  %v1493 = vadd.f32 %v992, %v1492
  %v1494 = vpop.f32.mrb[0].mxu0
  %v1495 = vadd.f32 %v997, %v1494
  %v1496 = vpop.f32.mrb[0].mxu0
  %v1497 = vadd.f32 %v997, %v1496
  %1498 = vmatprep.mubr.bf16.mxu0 0
  %1499 = vmatmul.mubr.bf16.gmra.mrb[0].mxu0 %v1048
  %v1500 = vpop.f32.mrb[0].mxu0
  %v1501 = vadd.f32 %v1002, %v1500
  %v1502 = vpop.f32.mrb[0].mxu0
  %v1503 = vadd.f32 %v1002, %v1502
  %v1504 = vpop.f32.mrb[0].mxu0
  %v1505 = vadd.f32 %v1007, %v1504
  %v1506 = vpop.f32.mrb[0].mxu0
  %v1507 = vadd.f32 %v1007, %v1506
  %1508 = vdwg.mxu0
  %v1509 = vmax.f32 %v1092, 0.0
  %v1510 = vmax.f32 %v1094, 0.0
  %v1511 = vmax.f32 %v1205, 0.0
  %v1512 = vmax.f32 %v1207, 0.0
  %v1513 = vmax.f32 %v1318, 0.0
  %v1514 = vmax.f32 %v1320, 0.0
  %v1515 = vmax.f32 %v1431, 0.0
  %v1516 = vmax.f32 %v1433, 0.0
  %v1517 = vmax.f32 %v1096, 0.0
  %v1518 = vmax.f32 %v1098, 0.0
  %v1519 = vmax.f32 %v1209, 0.0
  %v1520 = vmax.f32 %v1211, 0.0
  %v1521 = vmax.f32 %v1322, 0.0
  %v1522 = vmax.f32 %v1324, 0.0
  %v1523 = vmax.f32 %v1435, 0.0
  %v1524 = vmax.f32 %v1437, 0.0
  %v1525 = vmax.f32 %v1102, 0.0
  %v1526 = vmax.f32 %v1104, 0.0
  %v1527 = vmax.f32 %v1215, 0.0
  %v1528 = vmax.f32 %v1217, 0.0
  %v1529 = vmax.f32 %v1328, 0.0
  %v1530 = vmax.f32 %v1330, 0.0
  %v1531 = vmax.f32 %v1441, 0.0
  %v1532 = vmax.f32 %v1443, 0.0
  %v1533 = vmax.f32 %v1106, 0.0
  %v1534 = vmax.f32 %v1108, 0.0
  %v1535 = vmax.f32 %v1219, 0.0
  %v1536 = vmax.f32 %v1221, 0.0
  %v1537 = vmax.f32 %v1332, 0.0
  %v1538 = vmax.f32 %v1334, 0.0
  %v1539 = vmax.f32 %v1445, 0.0
  %v1540 = vmax.f32 %v1447, 0.0
  %v1541 = vmax.f32 %v1112, 0.0
  %v1542 = vmax.f32 %v1114, 0.0
  %v1543 = vmax.f32 %v1225, 0.0
  %v1544 = vmax.f32 %v1227, 0.0
  %v1545 = vmax.f32 %v1338, 0.0
  %v1546 = vmax.f32 %v1340, 0.0
  %v1547 = vmax.f32 %v1451, 0.0
  %v1548 = vmax.f32 %v1453, 0.0
  %v1549 = vmax.f32 %v1116, 0.0
  %v1550 = vmax.f32 %v1118, 0.0
  %v1551 = vmax.f32 %v1229, 0.0
  %v1552 = vmax.f32 %v1231, 0.0
  %v1553 = vmax.f32 %v1342, 0.0
  %v1554 = vmax.f32 %v1344, 0.0
  %v1555 = vmax.f32 %v1455, 0.0
  %v1556 = vmax.f32 %v1457, 0.0
  %v1557 = vmax.f32 %v1122, 0.0
  %v1558 = vmax.f32 %v1124, 0.0
  %v1559 = vmax.f32 %v1235, 0.0
  %v1560 = vmax.f32 %v1237, 0.0
  %v1561 = vmax.f32 %v1348, 0.0
  %v1562 = vmax.f32 %v1350, 0.0
  %v1563 = vmax.f32 %v1461, 0.0
  %v1564 = vmax.f32 %v1463, 0.0
  %v1565 = vmax.f32 %v1126, 0.0
  %v1566 = vmax.f32 %v1128, 0.0
  %v1567 = vmax.f32 %v1239, 0.0
  %v1568 = vmax.f32 %v1241, 0.0
  %v1569 = vmax.f32 %v1352, 0.0
  %v1570 = vmax.f32 %v1354, 0.0
  %v1571 = vmax.f32 %v1465, 0.0
  %v1572 = vmax.f32 %v1467, 0.0
  %v1573 = vmax.f32 %v1132, 0.0
  %v1574 = vmax.f32 %v1134, 0.0
  %v1575 = vmax.f32 %v1245, 0.0
  %v1576 = vmax.f32 %v1247, 0.0
  %v1577 = vmax.f32 %v1358, 0.0
  %v1578 = vmax.f32 %v1360, 0.0
  %v1579 = vmax.f32 %v1471, 0.0
  %v1580 = vmax.f32 %v1473, 0.0
  %v1581 = vmax.f32 %v1136, 0.0
  %v1582 = vmax.f32 %v1138, 0.0
  %v1583 = vmax.f32 %v1249, 0.0
  %v1584 = vmax.f32 %v1251, 0.0
  %v1585 = vmax.f32 %v1362, 0.0
  %v1586 = vmax.f32 %v1364, 0.0
  %v1587 = vmax.f32 %v1475, 0.0
  %v1588 = vmax.f32 %v1477, 0.0
  %v1589 = vmax.f32 %v1142, 0.0
  %v1590 = vmax.f32 %v1144, 0.0
  %v1591 = vmax.f32 %v1255, 0.0
  %v1592 = vmax.f32 %v1257, 0.0
  %v1593 = vmax.f32 %v1368, 0.0
  %v1594 = vmax.f32 %v1370, 0.0
  %v1595 = vmax.f32 %v1481, 0.0
  %v1596 = vmax.f32 %v1483, 0.0
  %v1597 = vmax.f32 %v1146, 0.0
  %v1598 = vmax.f32 %v1148, 0.0
  %v1599 = vmax.f32 %v1259, 0.0
  %v1600 = vmax.f32 %v1261, 0.0
  %v1601 = vmax.f32 %v1372, 0.0
  %v1602 = vmax.f32 %v1374, 0.0
  %v1603 = vmax.f32 %v1485, 0.0
  %v1604 = vmax.f32 %v1487, 0.0
  %v1605 = vmax.f32 %v1152, 0.0
  %v1606 = vmax.f32 %v1154, 0.0
  %v1607 = vmax.f32 %v1265, 0.0
  %v1608 = vmax.f32 %v1267, 0.0
  %v1609 = vmax.f32 %v1378, 0.0
  %v1610 = vmax.f32 %v1380, 0.0
  %v1611 = vmax.f32 %v1491, 0.0
  %v1612 = vmax.f32 %v1493, 0.0
  %v1613 = vmax.f32 %v1156, 0.0
  %v1614 = vmax.f32 %v1158, 0.0
  %v1615 = vmax.f32 %v1269, 0.0
  %v1616 = vmax.f32 %v1271, 0.0
  %v1617 = vmax.f32 %v1382, 0.0
  %v1618 = vmax.f32 %v1384, 0.0
  %v1619 = vmax.f32 %v1495, 0.0
  %v1620 = vmax.f32 %v1497, 0.0
  %v1621 = vmax.f32 %v1162, 0.0
  %v1622 = vmax.f32 %v1164, 0.0
  %v1623 = vmax.f32 %v1275, 0.0
  %v1624 = vmax.f32 %v1277, 0.0
  %v1625 = vmax.f32 %v1388, 0.0
  %v1626 = vmax.f32 %v1390, 0.0
  %v1627 = vmax.f32 %v1501, 0.0
  %v1628 = vmax.f32 %v1503, 0.0
  %v1629 = vmax.f32 %v1166, 0.0
  %v1630 = vmax.f32 %v1168, 0.0
  %v1631 = vmax.f32 %v1279, 0.0
  %v1632 = vmax.f32 %v1281, 0.0
  %v1633 = vmax.f32 %v1392, 0.0
  %v1634 = vmax.f32 %v1394, 0.0
  %v1635 = vmax.f32 %v1505, 0.0
  %v1636 = vmax.f32 %v1507, 0.0
  %v1637 = vld [vmem:[%s5] sm:$0xff]
  %v1638 = vld [vmem:[%s5 + $0x8] sm:$0xff]
  %v1639 = vld [vmem:[%s5 + $0x10] sm:$0xff]
  %v1640 = vld [vmem:[%s5 + $0x18] sm:$0xff]
  %v1641 = vld [vmem:[%s5 + $0x20] sm:$0xff]
  %v1642 = vld [vmem:[%s5 + $0x28] sm:$0xff]
  %v1643 = vld [vmem:[%s5 + $0x30] sm:$0xff]
  %v1644 = vld [vmem:[%s5 + $0x38] sm:$0xff]
  %v1645 = vld [vmem:[%s5 + $0x40] sm:$0xff]
  %v1646 = vld [vmem:[%s5 + $0x48] sm:$0xff]
  %v1647 = vld [vmem:[%s5 + $0x50] sm:$0xff]
  %v1648 = vld [vmem:[%s5 + $0x58] sm:$0xff]
  %v1649 = vld [vmem:[%s5 + $0x60] sm:$0xff]
  %v1650 = vld [vmem:[%s5 + $0x68] sm:$0xff]
  %v1651 = vld [vmem:[%s5 + $0x70] sm:$0xff]
  %v1652 = vld [vmem:[%s5 + $0x78] sm:$0xff]
  %1654 = vset.pattern.permute.xlu0 0
  %1655 = vperm.xlu0 %1654, %v1637
  %v1656 = vpop.permute.xlu0 %1655
  %1659 = vset.pattern.permute.xlu0 0
  %1660 = vperm.xlu0 %1659, %v1638
  %v1661 = vpop.permute.xlu0 %1660
  %1664 = vset.pattern.permute.xlu0 0
  %1665 = vperm.xlu0 %1664, %v1639
  %v1666 = vpop.permute.xlu0 %1665
  %1669 = vset.pattern.permute.xlu0 0
  %1670 = vperm.xlu0 %1669, %v1640
  %v1671 = vpop.permute.xlu0 %1670
  %1674 = vset.pattern.permute.xlu0 0
  %1675 = vperm.xlu0 %1674, %v1641
  %v1676 = vpop.permute.xlu0 %1675
  %1679 = vset.pattern.permute.xlu0 0
  %1680 = vperm.xlu0 %1679, %v1642
  %v1681 = vpop.permute.xlu0 %1680
  %1684 = vset.pattern.permute.xlu0 0
  %1685 = vperm.xlu0 %1684, %v1643
  %v1686 = vpop.permute.xlu0 %1685
  %1689 = vset.pattern.permute.xlu0 0
  %1690 = vperm.xlu0 %1689, %v1644
  %v1691 = vpop.permute.xlu0 %1690
  %1694 = vset.pattern.permute.xlu0 0
  %1695 = vperm.xlu0 %1694, %v1645
  %v1696 = vpop.permute.xlu0 %1695
  %1699 = vset.pattern.permute.xlu0 0
  %1700 = vperm.xlu0 %1699, %v1646
  %v1701 = vpop.permute.xlu0 %1700
  %1704 = vset.pattern.permute.xlu0 0
  %1705 = vperm.xlu0 %1704, %v1647
  %v1706 = vpop.permute.xlu0 %1705
  %1709 = vset.pattern.permute.xlu0 0
  %1710 = vperm.xlu0 %1709, %v1648
  %v1711 = vpop.permute.xlu0 %1710
  %1714 = vset.pattern.permute.xlu0 0
  %1715 = vperm.xlu0 %1714, %v1649
  %v1716 = vpop.permute.xlu0 %1715
  %1719 = vset.pattern.permute.xlu0 0
  %1720 = vperm.xlu0 %1719, %v1650
  %v1721 = vpop.permute.xlu0 %1720
  %1724 = vset.pattern.permute.xlu0 0
  %1725 = vperm.xlu0 %1724, %v1651
  %v1726 = vpop.permute.xlu0 %1725
  %1729 = vset.pattern.permute.xlu0 0
  %1730 = vperm.xlu0 %1729, %v1652
  %v1731 = vpop.permute.xlu0 %1730
  %v1733 = vmul.f32 %v1509, %v1656
  %v1734 = vmul.f32 %v1510, %v1656
  %v1735 = vmul.f32 %v1511, %v1656
  %v1736 = vmul.f32 %v1512, %v1656
  %v1737 = vmul.f32 %v1513, %v1656
  %v1738 = vmul.f32 %v1514, %v1656
  %v1739 = vmul.f32 %v1515, %v1656
  %v1740 = vmul.f32 %v1516, %v1656
  %v1741 = vmul.f32 %v1517, %v1661
  %v1742 = vmul.f32 %v1518, %v1661
  %v1743 = vmul.f32 %v1519, %v1661
  %v1744 = vmul.f32 %v1520, %v1661
  %v1745 = vmul.f32 %v1521, %v1661
  %v1746 = vmul.f32 %v1522, %v1661
  %v1747 = vmul.f32 %v1523, %v1661
  %v1748 = vmul.f32 %v1524, %v1661
  %v1749 = vmul.f32 %v1525, %v1666
  %v1750 = vmul.f32 %v1526, %v1666
  %v1751 = vmul.f32 %v1527, %v1666
  %v1752 = vmul.f32 %v1528, %v1666
  %v1753 = vmul.f32 %v1529, %v1666
  %v1754 = vmul.f32 %v1530, %v1666
  %v1755 = vmul.f32 %v1531, %v1666
  %v1756 = vmul.f32 %v1532, %v1666
  %v1757 = vmul.f32 %v1533, %v1671
  %v1758 = vmul.f32 %v1534, %v1671
  %v1759 = vmul.f32 %v1535, %v1671
  %v1760 = vmul.f32 %v1536, %v1671
  %v1761 = vmul.f32 %v1537, %v1671
  %v1762 = vmul.f32 %v1538, %v1671
  %v1763 = vmul.f32 %v1539, %v1671
  %v1764 = vmul.f32 %v1540, %v1671
  %v1765 = vmul.f32 %v1541, %v1676
  %v1766 = vmul.f32 %v1542, %v1676
  %v1767 = vmul.f32 %v1543, %v1676
  %v1768 = vmul.f32 %v1544, %v1676
  %v1769 = vmul.f32 %v1545, %v1676
  %v1770 = vmul.f32 %v1546, %v1676
  %v1771 = vmul.f32 %v1547, %v1676
  %v1772 = vmul.f32 %v1548, %v1676
  %v1773 = vmul.f32 %v1549, %v1681
  %v1774 = vmul.f32 %v1550, %v1681
  %v1775 = vmul.f32 %v1551, %v1681
  %v1776 = vmul.f32 %v1552, %v1681
  %v1777 = vmul.f32 %v1553, %v1681
  %v1778 = vmul.f32 %v1554, %v1681
  %v1779 = vmul.f32 %v1555, %v1681
  %v1780 = vmul.f32 %v1556, %v1681
  %v1781 = vmul.f32 %v1557, %v1686
  %v1782 = vmul.f32 %v1558, %v1686
  %v1783 = vmul.f32 %v1559, %v1686
  %v1784 = vmul.f32 %v1560, %v1686
  %v1785 = vmul.f32 %v1561, %v1686
  %v1786 = vmul.f32 %v1562, %v1686
  %v1787 = vmul.f32 %v1563, %v1686
  %v1788 = vmul.f32 %v1564, %v1686
  %v1789 = vmul.f32 %v1565, %v1691
  %v1790 = vmul.f32 %v1566, %v1691
  %v1791 = vmul.f32 %v1567, %v1691
  %v1792 = vmul.f32 %v1568, %v1691
  %v1793 = vmul.f32 %v1569, %v1691
  %v1794 = vmul.f32 %v1570, %v1691
  %v1795 = vmul.f32 %v1571, %v1691
  %v1796 = vmul.f32 %v1572, %v1691
  %v1797 = vmul.f32 %v1573, %v1696
  %v1798 = vmul.f32 %v1574, %v1696
  %v1799 = vmul.f32 %v1575, %v1696
  %v1800 = vmul.f32 %v1576, %v1696
  %v1801 = vmul.f32 %v1577, %v1696
  %v1802 = vmul.f32 %v1578, %v1696
  %v1803 = vmul.f32 %v1579, %v1696
  %v1804 = vmul.f32 %v1580, %v1696
  %v1805 = vmul.f32 %v1581, %v1701
  %v1806 = vmul.f32 %v1582, %v1701
  %v1807 = vmul.f32 %v1583, %v1701
  %v1808 = vmul.f32 %v1584, %v1701
  %v1809 = vmul.f32 %v1585, %v1701
  %v1810 = vmul.f32 %v1586, %v1701
  %v1811 = vmul.f32 %v1587, %v1701
  %v1812 = vmul.f32 %v1588, %v1701
  %v1813 = vmul.f32 %v1589, %v1706
  %v1814 = vmul.f32 %v1590, %v1706
  %v1815 = vmul.f32 %v1591, %v1706
  %v1816 = vmul.f32 %v1592, %v1706
  %v1817 = vmul.f32 %v1593, %v1706
  %v1818 = vmul.f32 %v1594, %v1706
  %v1819 = vmul.f32 %v1595, %v1706
  %v1820 = vmul.f32 %v1596, %v1706
  %v1821 = vmul.f32 %v1597, %v1711
  %v1822 = vmul.f32 %v1598, %v1711
  %v1823 = vmul.f32 %v1599, %v1711
  %v1824 = vmul.f32 %v1600, %v1711
  %v1825 = vmul.f32 %v1601, %v1711
  %v1826 = vmul.f32 %v1602, %v1711
  %v1827 = vmul.f32 %v1603, %v1711
  %v1828 = vmul.f32 %v1604, %v1711
  %v1829 = vmul.f32 %v1605, %v1716
  %v1830 = vmul.f32 %v1606, %v1716
  %v1831 = vmul.f32 %v1607, %v1716
  %v1832 = vmul.f32 %v1608, %v1716
  %v1833 = vmul.f32 %v1609, %v1716
  %v1834 = vmul.f32 %v1610, %v1716
  %v1835 = vmul.f32 %v1611, %v1716
  %v1836 = vmul.f32 %v1612, %v1716
  %v1837 = vmul.f32 %v1613, %v1721
  %v1838 = vmul.f32 %v1614, %v1721
  %v1839 = vmul.f32 %v1615, %v1721
  %v1840 = vmul.f32 %v1616, %v1721
  %v1841 = vmul.f32 %v1617, %v1721
  %v1842 = vmul.f32 %v1618, %v1721
  %v1843 = vmul.f32 %v1619, %v1721
  %v1844 = vmul.f32 %v1620, %v1721
  %v1845 = vmul.f32 %v1621, %v1726
  %v1846 = vmul.f32 %v1622, %v1726
  %v1847 = vmul.f32 %v1623, %v1726
  %v1848 = vmul.f32 %v1624, %v1726
  %v1849 = vmul.f32 %v1625, %v1726
  %v1850 = vmul.f32 %v1626, %v1726
  %v1851 = vmul.f32 %v1627, %v1726
  %v1852 = vmul.f32 %v1628, %v1726
  %v1853 = vmul.f32 %v1629, %v1731
  %v1854 = vmul.f32 %v1630, %v1731
  %v1855 = vmul.f32 %v1631, %v1731
  %v1856 = vmul.f32 %v1632, %v1731
  %v1857 = vmul.f32 %v1633, %v1731
  %v1858 = vmul.f32 %v1634, %v1731
  %v1859 = vmul.f32 %v1635, %v1731
  %v1860 = vmul.f32 %v1636, %v1731
  %v1861 = vadd.f32 %v1733, %v1741
  %v1862 = vadd.f32 %v1861, %v1749
  %v1863 = vadd.f32 %v1862, %v1757
  %v1864 = vadd.f32 %v1863, %v1765
  %v1865 = vadd.f32 %v1864, %v1773
  %v1866 = vadd.f32 %v1865, %v1781
  %v1867 = vadd.f32 %v1866, %v1789
  %v1868 = vadd.f32 %v1867, %v1797
  %v1869 = vadd.f32 %v1868, %v1805
  %v1870 = vadd.f32 %v1869, %v1813
  %v1871 = vadd.f32 %v1870, %v1821
  %v1872 = vadd.f32 %v1871, %v1829
  %v1873 = vadd.f32 %v1872, %v1837
  %v1874 = vadd.f32 %v1873, %v1845
  %v1875 = vadd.f32 %v1874, %v1853
  %v1876 = vrot.slane %v1875, 4
  %v1877 = vadd.f32 %v1875, %v1876
  %v1878 = vrot.slane %v1877, 2
  %v1879 = vadd.f32 %v1877, %v1878
  %v1880 = vrot.slane %v1879, 1
  %v1881 = vadd.f32 %v1879, %v1880
  %v1882 = vadd.f32 %v1734, %v1742
  %v1883 = vadd.f32 %v1882, %v1750
  %v1884 = vadd.f32 %v1883, %v1758
  %v1885 = vadd.f32 %v1884, %v1766
  %v1886 = vadd.f32 %v1885, %v1774
  %v1887 = vadd.f32 %v1886, %v1782
  %v1888 = vadd.f32 %v1887, %v1790
  %v1889 = vadd.f32 %v1888, %v1798
  %v1890 = vadd.f32 %v1889, %v1806
  %v1891 = vadd.f32 %v1890, %v1814
  %v1892 = vadd.f32 %v1891, %v1822
  %v1893 = vadd.f32 %v1892, %v1830
  %v1894 = vadd.f32 %v1893, %v1838
  %v1895 = vadd.f32 %v1894, %v1846
  %v1896 = vadd.f32 %v1895, %v1854
  %v1897 = vrot.slane %v1896, 4
  %v1898 = vadd.f32 %v1896, %v1897
  %v1899 = vrot.slane %v1898, 2
  %v1900 = vadd.f32 %v1898, %v1899
  %v1901 = vrot.slane %v1900, 1
  %v1902 = vadd.f32 %v1900, %v1901
  %v1903 = vadd.f32 %v1735, %v1743
  %v1904 = vadd.f32 %v1903, %v1751
  %v1905 = vadd.f32 %v1904, %v1759
  %v1906 = vadd.f32 %v1905, %v1767
  %v1907 = vadd.f32 %v1906, %v1775
  %v1908 = vadd.f32 %v1907, %v1783
  %v1909 = vadd.f32 %v1908, %v1791
  %v1910 = vadd.f32 %v1909, %v1799
  %v1911 = vadd.f32 %v1910, %v1807
  %v1912 = vadd.f32 %v1911, %v1815
  %v1913 = vadd.f32 %v1912, %v1823
  %v1914 = vadd.f32 %v1913, %v1831
  %v1915 = vadd.f32 %v1914, %v1839
  %v1916 = vadd.f32 %v1915, %v1847
  %v1917 = vadd.f32 %v1916, %v1855
  %v1918 = vrot.slane %v1917, 4
  %v1919 = vadd.f32 %v1917, %v1918
  %v1920 = vrot.slane %v1919, 2
  %v1921 = vadd.f32 %v1919, %v1920
  %v1922 = vrot.slane %v1921, 1
  %v1923 = vadd.f32 %v1921, %v1922
  %v1924 = vadd.f32 %v1736, %v1744
  %v1925 = vadd.f32 %v1924, %v1752
  %v1926 = vadd.f32 %v1925, %v1760
  %v1927 = vadd.f32 %v1926, %v1768
  %v1928 = vadd.f32 %v1927, %v1776
  %v1929 = vadd.f32 %v1928, %v1784
  %v1930 = vadd.f32 %v1929, %v1792
  %v1931 = vadd.f32 %v1930, %v1800
  %v1932 = vadd.f32 %v1931, %v1808
  %v1933 = vadd.f32 %v1932, %v1816
  %v1934 = vadd.f32 %v1933, %v1824
  %v1935 = vadd.f32 %v1934, %v1832
  %v1936 = vadd.f32 %v1935, %v1840
  %v1937 = vadd.f32 %v1936, %v1848
  %v1938 = vadd.f32 %v1937, %v1856
  %v1939 = vrot.slane %v1938, 4
  %v1940 = vadd.f32 %v1938, %v1939
  %v1941 = vrot.slane %v1940, 2
  %v1942 = vadd.f32 %v1940, %v1941
  %v1943 = vrot.slane %v1942, 1
  %v1944 = vadd.f32 %v1942, %v1943
  %v1945 = vadd.f32 %v1737, %v1745
  %v1946 = vadd.f32 %v1945, %v1753
  %v1947 = vadd.f32 %v1946, %v1761
  %v1948 = vadd.f32 %v1947, %v1769
  %v1949 = vadd.f32 %v1948, %v1777
  %v1950 = vadd.f32 %v1949, %v1785
  %v1951 = vadd.f32 %v1950, %v1793
  %v1952 = vadd.f32 %v1951, %v1801
  %v1953 = vadd.f32 %v1952, %v1809
  %v1954 = vadd.f32 %v1953, %v1817
  %v1955 = vadd.f32 %v1954, %v1825
  %v1956 = vadd.f32 %v1955, %v1833
  %v1957 = vadd.f32 %v1956, %v1841
  %v1958 = vadd.f32 %v1957, %v1849
  %v1959 = vadd.f32 %v1958, %v1857
  %v1960 = vrot.slane %v1959, 4
  %v1961 = vadd.f32 %v1959, %v1960
  %v1962 = vrot.slane %v1961, 2
  %v1963 = vadd.f32 %v1961, %v1962
  %v1964 = vrot.slane %v1963, 1
  %v1965 = vadd.f32 %v1963, %v1964
  %v1966 = vadd.f32 %v1738, %v1746
  %v1967 = vadd.f32 %v1966, %v1754
  %v1968 = vadd.f32 %v1967, %v1762
  %v1969 = vadd.f32 %v1968, %v1770
  %v1970 = vadd.f32 %v1969, %v1778
  %v1971 = vadd.f32 %v1970, %v1786
  %v1972 = vadd.f32 %v1971, %v1794
  %v1973 = vadd.f32 %v1972, %v1802
  %v1974 = vadd.f32 %v1973, %v1810
  %v1975 = vadd.f32 %v1974, %v1818
  %v1976 = vadd.f32 %v1975, %v1826
  %v1977 = vadd.f32 %v1976, %v1834
  %v1978 = vadd.f32 %v1977, %v1842
  %v1979 = vadd.f32 %v1978, %v1850
  %v1980 = vadd.f32 %v1979, %v1858
  %v1981 = vrot.slane %v1980, 4
  %v1982 = vadd.f32 %v1980, %v1981
  %v1983 = vrot.slane %v1982, 2
  %v1984 = vadd.f32 %v1982, %v1983
  %v1985 = vrot.slane %v1984, 1
  %v1986 = vadd.f32 %v1984, %v1985
  %v1987 = vadd.f32 %v1739, %v1747
  %v1988 = vadd.f32 %v1987, %v1755
  %v1989 = vadd.f32 %v1988, %v1763
  %v1990 = vadd.f32 %v1989, %v1771
  %v1991 = vadd.f32 %v1990, %v1779
  %v1992 = vadd.f32 %v1991, %v1787
  %v1993 = vadd.f32 %v1992, %v1795
  %v1994 = vadd.f32 %v1993, %v1803
  %v1995 = vadd.f32 %v1994, %v1811
  %v1996 = vadd.f32 %v1995, %v1819
  %v1997 = vadd.f32 %v1996, %v1827
  %v1998 = vadd.f32 %v1997, %v1835
  %v1999 = vadd.f32 %v1998, %v1843
  %v2000 = vadd.f32 %v1999, %v1851
  %v2001 = vadd.f32 %v2000, %v1859
  %v2002 = vrot.slane %v2001, 4
  %v2003 = vadd.f32 %v2001, %v2002
  %v2004 = vrot.slane %v2003, 2
  %v2005 = vadd.f32 %v2003, %v2004
  %v2006 = vrot.slane %v2005, 1
  %v2007 = vadd.f32 %v2005, %v2006
  %v2008 = vadd.f32 %v1740, %v1748
  %v2009 = vadd.f32 %v2008, %v1756
  %v2010 = vadd.f32 %v2009, %v1764
  %v2011 = vadd.f32 %v2010, %v1772
  %v2012 = vadd.f32 %v2011, %v1780
  %v2013 = vadd.f32 %v2012, %v1788
  %v2014 = vadd.f32 %v2013, %v1796
  %v2015 = vadd.f32 %v2014, %v1804
  %v2016 = vadd.f32 %v2015, %v1812
  %v2017 = vadd.f32 %v2016, %v1820
  %v2018 = vadd.f32 %v2017, %v1828
  %v2019 = vadd.f32 %v2018, %v1836
  %v2020 = vadd.f32 %v2019, %v1844
  %v2021 = vadd.f32 %v2020, %v1852
  %v2022 = vadd.f32 %v2021, %v1860
  %v2023 = vrot.slane %v2022, 4
  %v2024 = vadd.f32 %v2022, %v2023
  %v2025 = vrot.slane %v2024, 2
  %v2026 = vadd.f32 %v2024, %v2025
  %v2027 = vrot.slane %v2026, 1
  %v2028 = vadd.f32 %v2026, %v2027
  %s2029 = sld [smem:[#allocation2]]
  %v2030 = vstv %s2029
  %v2031 = vadd.f32 %v1881, %v2030
  %v2032 = vadd.f32 %v1902, %v2030
  %v2033 = vadd.f32 %v1923, %v2030
  %v2034 = vadd.f32 %v1944, %v2030
  %v2035 = vadd.f32 %v1965, %v2030
  %v2036 = vadd.f32 %v1986, %v2030
  %v2037 = vadd.f32 %v2007, %v2030
  %v2038 = vadd.f32 %v2028, %v2030
  %v2039 = vsub.f32 0.0, %v2031
  %v2040 = vsub.f32 0.0, %v2032
  %v2041 = vsub.f32 0.0, %v2033
  %v2042 = vsub.f32 0.0, %v2034
  %v2043 = vsub.f32 0.0, %v2035
  %v2044 = vsub.f32 0.0, %v2036
  %v2045 = vsub.f32 0.0, %v2037
  %v2046 = vsub.f32 0.0, %v2038
  %v2047 = vmul.f32 %v2039, 1.442695
  %v2048 = vpow.pop %v2047
  %v2049 = vmul.f32 %v2040, 1.442695
  %v2050 = vpow.pop %v2049
  %v2051 = vmul.f32 %v2041, 1.442695
  %v2052 = vpow.pop %v2051
  %v2053 = vmul.f32 %v2042, 1.442695
  %v2054 = vpow.pop %v2053
  %v2055 = vmul.f32 %v2043, 1.442695
  %v2056 = vpow.pop %v2055
  %v2057 = vmul.f32 %v2044, 1.442695
  %v2058 = vpow.pop %v2057
  %v2059 = vmul.f32 %v2045, 1.442695
  %v2060 = vpow.pop %v2059
  %v2061 = vmul.f32 %v2046, 1.442695
  %v2062 = vpow.pop %v2061
  %v2063 = vadd.f32 %v2048, 1.0
  %v2064 = vadd.f32 %v2050, 1.0
  %v2065 = vadd.f32 %v2052, 1.0
  %v2066 = vadd.f32 %v2054, 1.0
  %v2067 = vadd.f32 %v2056, 1.0
  %v2068 = vadd.f32 %v2058, 1.0
  %v2069 = vadd.f32 %v2060, 1.0
  %v2070 = vadd.f32 %v2062, 1.0
  %v2071 = vrcp.pop %v2063
  %v2072 = vrcp.pop %v2064
  %v2073 = vrcp.pop %v2065
  %v2074 = vrcp.pop %v2066
  %v2075 = vrcp.pop %v2067
  %v2076 = vrcp.pop %v2068
  %v2077 = vrcp.pop %v2069
  %v2078 = vrcp.pop %v2070
  %v2087 = vcombine.low %v2071, %v2072
  %v2088 = vcombine.low %v2073, %v2074
  %v2089 = vcombine.low %v2075, %v2076
  %v2090 = vcombine.low %v2077, %v2078
  %v2092 = vunpack.c.l.s4 1966171168
  %v2093 = vunpack.c.0.s8 %v2092
  %v2094 = vlaneseq
  %v2095 = vshrl.u32 %v2094, 7
  %v2096 = vsub.s32 %v2093, %v2095
  %v2097 = vrot.slane %v2087, %v2096
  %v2099 = vunpack.c.l.s4 1966171168
  %v2100 = vunpack.c.0.s8 %v2099
  %v2101 = vlaneseq
  %v2102 = vshrl.u32 %v2101, 7
  %v2103 = vsub.s32 %v2100, %v2102
  %v2104 = vrot.slane %v2088, %v2103
  %v2106 = vunpack.c.l.s4 1966171168
  %v2107 = vunpack.c.0.s8 %v2106
  %v2108 = vlaneseq
  %v2109 = vshrl.u32 %v2108, 7
  %v2110 = vsub.s32 %v2107, %v2109
  %v2111 = vrot.slane %v2089, %v2110
  %v2113 = vunpack.c.l.s4 1966171168
  %v2114 = vunpack.c.0.s8 %v2113
  %v2115 = vlaneseq
  %v2116 = vshrl.u32 %v2115, 7
  %v2117 = vsub.s32 %v2114, %v2116
  %v2118 = vrot.slane %v2090, %v2117
  %v2119 = vcombine.low %v2097, %v2104
  %v2120 = vcombine.low %v2111, %v2118
  %v2122 = vunpack.c.l.s4 1966171168
  %v2123 = vunpack.c.0.s8 %v2122
  %v2124 = vlaneseq
  %v2125 = vshrl.u32 %v2124, 7
  %v2126 = vsub.s32 %v2123, %v2125
  %v2127 = vrot.slane %v2119, %v2126
  %v2129 = vunpack.c.l.s4 1966171168
  %v2130 = vunpack.c.0.s8 %v2129
  %v2131 = vlaneseq
  %v2132 = vshrl.u32 %v2131, 7
  %v2133 = vsub.s32 %v2130, %v2132
  %v2134 = vrot.slane %v2120, %v2133
  %v2135 = vcombine.low %v2127, %v2134
  %2137 = vst [vmem:[%s7] sm:$0xff] %v2135
  // Predicated region
  $region30: #{discriminator_forward.1} parent=0 // pred_check
    _
  $region31: #{discriminator_forward.1} parent=0 // pred_check_branch
    %2139 = sbr.rel (0) target = $region33
  $region32: #{discriminator_forward.1} parent=0 // pred_region
    _
  $region33: #{discriminator_forward.1} parent=0 // pred_fallthru
    _
  // Predicated region
  $region34: #{discriminator_forward.1} parent=0 // pred_check
    _
  $region35: #{discriminator_forward.1} parent=0 // pred_check_branch
    %2141 = sbr.rel (0) target = $region37
  $region36: #{discriminator_forward.1} parent=0 // pred_region
    _
  $region37: #{discriminator_forward.1} parent=0 // pred_fallthru
    _

</llo_original>
